<compile_context>
chip_gen: v7x
topology: tpu7x:2x2x1
jax: 0.10.0
libtpu: 0.0.40
codegen_flags: <defaults>
</compile_context>

<pallas_src>
import jax
import jax.numpy as jnp
from jax.experimental import pallas as pl
from jax.experimental.pallas import tpu as pltpu

EPS = 1e-5  # nn.BatchNorm2d default eps
# 3x3 taps in (kh, kw) row-major order, matching the conv-weight reshape below.
_TAPS = tuple((dy, dx) for dy in (-1, 0, 1) for dx in (-1, 0, 1))


# ----------------------------------------------------------------------------
# Bilinear interpolation matrices (align_corners=True) and the separable
# upsample(+pad)-to-x2-size operators, built once in the wrapper.
# ----------------------------------------------------------------------------
def _bilinear_matrix(out_size, in_size):
    """A (out_size, in_size) with out = A @ in, align_corners=True."""
    if in_size == 1:
        return jnp.ones((out_size, 1), jnp.float32)
    if out_size == 1:
        return jnp.zeros((1, in_size), jnp.float32).at[0, 0].set(1.0)
    i = jnp.arange(out_size, dtype=jnp.float32)
    src = i * (in_size - 1) / (out_size - 1)
    lo = jnp.clip(jnp.floor(src).astype(jnp.int32), 0, in_size - 2)
    frac = src - lo.astype(jnp.float32)
    hi = lo + 1
    oh_lo = jax.nn.one_hot(lo, in_size, dtype=jnp.float32)
    oh_hi = jax.nn.one_hot(hi, in_size, dtype=jnp.float32)
    return oh_lo * (1.0 - frac)[:, None] + oh_hi * frac[:, None]


def _padded_upsample_ops(Hi, Wi, H2, W2):
    """Separable operators for 2x bilinear upsample (align_corners=True) followed by
    the F.pad-to-x2-size zero padding: ah_p (H2, Hi), aw_p (W2, Wi)."""
    ah = _bilinear_matrix(2 * Hi, Hi)
    aw = _bilinear_matrix(2 * Wi, Wi)
    pad_t = (H2 - 2 * Hi) // 2
    pad_l = (W2 - 2 * Wi) // 2
    # TODO(synk): negative diffs (cropping) not supported (not used by this UNet).
    ah_p = jnp.zeros((H2, Hi), jnp.float32).at[pad_t:pad_t + 2 * Hi, :].set(ah)
    aw_p = jnp.zeros((W2, Wi), jnp.float32).at[pad_l:pad_l + 2 * Wi, :].set(aw)
    return ah_p, aw_p


# ----------------------------------------------------------------------------
# Kernel 1: separable bilinear 2x upsample + pad, grid over images.
# ----------------------------------------------------------------------------
def _upsample_kernel(x1_ref, ah_ref, aw_ref, o_ref):
    # Channel-batched GEMMs (f32, tiny relative to the convs):
    #   (C1,H2,Hi)@(C1,Hi,Wi) -> (C1,H2,Wi) ; (C1,H2,Wi)@(C1,Wi,W2) -> (C1,H2,W2)
    t = jnp.einsum("coh,chw->cow", ah_ref[...], x1_ref[...],
                   preferred_element_type=jnp.float32)
    o_ref[...] = jnp.einsum("cow,cwq->coq", t, aw_ref[...],
                            preferred_element_type=jnp.float32)


# ----------------------------------------------------------------------------
# Kernel 2: fused concat -> (conv3x3 -> BN -> ReLU) x 2 on the lane-dense (C, L)
# layout, L = N*H*W on lanes; taps folded into the MXU contraction dimension.
# ----------------------------------------------------------------------------
def _make_conv_kernel(W, L):
    inv_l = 1.0 / float(L)

    def kernel(x_ref, m_ref, w1_ref, w2_ref, g1_ref, be1_ref, g2_ref, be2_ref,
               o_ref):
        m = m_ref[...]                               # (9, L) f32 {0,1} edge masks

        def stacked_taps(a):
            # Stack the 9 shifted+masked copies on the contraction dim so each conv
            # is ONE big-K GEMM.  Rolls go to the XLU; masks are one vmul per tap.
            pieces = []
            for t, (dy, dx) in enumerate(_TAPS):
                d = dy * W + dx
                if d == 0:
                    pieces.append(a)                 # center tap: no roll, no mask
                else:
                    r = pltpu.roll(a, shift=(-d) % L, axis=1)
                    pieces.append(r * m[t:t + 1, :])
            # bf16 feed for the MXU (f32 accumulation at the dot below).
            return jnp.concatenate(pieces, axis=0).astype(jnp.bfloat16)

        def bn_relu(acc, gamma, beta):
            # Train-mode BatchNorm: one-pass lane-axis stats in f32, folded into a
            # single per-channel scale/shift, fused with ReLU.  Conv bias is dropped
            # (exactly cancelled by the mean subtraction).
            s1 = jnp.sum(acc, axis=1, keepdims=True)
            s2 = jnp.sum(acc * acc, axis=1, keepdims=True)
            mean = s1 * inv_l
            var = s2 * inv_l - mean * mean
            scale = gamma * jax.lax.rsqrt(var + EPS)
            shift = beta - mean * scale
            return jnp.maximum(acc * scale + shift, 0.0)

        # conv1: (Cp, 9*Cin) @ (9*Cin, L), bf16 in / f32 acc.
        a1 = jnp.dot(w1_ref[...], stacked_taps(x_ref[...]),
                     preferred_element_type=jnp.float32)
        y1 = bn_relu(a1, g1_ref[...], be1_ref[...])
        # conv2: (Cout, 9*Cp) @ (9*Cp, L).
        a2 = jnp.dot(w2_ref[...], stacked_taps(y1),
                     preferred_element_type=jnp.float32)
        o_ref[...] = bn_relu(a2, g2_ref[...], be2_ref[...])   # (Cout, L) lane-dense

    return kernel


def _vmem_limit_bytes():
    # Generation-aware budget (v7x: 64 MiB physical, v5e/v6e: 128 MiB).
    try:
        cap = int(pltpu.get_tpu_info().vmem_capacity_bytes)
    except Exception:
        cap = 64 * 1024 * 1024
    return (cap * 3) // 4


# ----------------------------------------------------------------------------
# Up.forward (NCHW in / NCHW out, matching the PyTorch module)
# ----------------------------------------------------------------------------
def up_forward(x1_nchw, x2_nchw, params):
    N, C1, Hi, Wi = x1_nchw.shape
    N2, C2, H2, W2 = x2_nchw.shape
    assert N2 == N
    Cout = params["w2"].shape[-1]
    Cin = C1 + C2
    L = N * H2 * W2
    Cp = max(8, ((Cout + 7) // 8) * 8)   # pad conv1 out-channels to a sublane multiple

    f32, bf16 = jnp.float32, jnp.bfloat16

    # -------- call 1: separable upsample + pad, gridded over N ("parallel") --------
    ah_p, aw_p = _padded_upsample_ops(Hi, Wi, H2, W2)
    ah_b = jnp.broadcast_to(ah_p, (C1, H2, Hi))
    aw_bT = jnp.broadcast_to(aw_p.T, (C1, Wi, W2))

    x1u = pl.pallas_call(
        _upsample_kernel,
        out_shape=jax.ShapeDtypeStruct((C1, N * H2, W2), f32),
        grid=(N,),
        in_specs=[
            pl.BlockSpec((None, C1, Hi, Wi), lambda n: (n, 0, 0, 0)),
            pl.BlockSpec((C1, H2, Hi), lambda n: (0, 0, 0)),
            pl.BlockSpec((C1, Wi, W2), lambda n: (0, 0, 0)),
        ],
        out_specs=pl.BlockSpec((C1, H2, W2), lambda n: (0, n, 0)),
        compiler_params=pltpu.CompilerParams(dimension_semantics=("parallel",)),
    )(x1_nchw.astype(f32), ah_b, aw_bT)

    # Free HBM metadata reshape into the lane-dense (C, N*H*W) layout; wrapper-side
    # concat == torch.cat([x2, x1], dim=1).
    # TODO(synk): once the conv kernel is L-tiled, fuse the upsample into it so this
    #   x1u round-trip disappears.
    x1u_flat = x1u.reshape(C1, L)
    x2f = jnp.transpose(x2_nchw, (1, 0, 2, 3)).reshape(C2, L).astype(f32)
    x = jnp.concatenate([x2f, x1u_flat], axis=0)               # (Cin, L)

    # Precomputed {0,1} edge masks for the 9 taps (axis-aligned taps use a single
    # condition); the kernel only does one vmul per tap.
    lane = jnp.arange(L)
    xpos = lane % W2
    ypos = (lane // W2) % H2
    rows = []
    for dy, dx in _TAPS:
        ok = jnp.ones((L,), jnp.bool_)
        if dx != 0:
            ok = ok & ((xpos + dx >= 0) & (xpos + dx < W2))
        if dy != 0:
            ok = ok & ((ypos + dy >= 0) & (ypos + dy < H2))
        rows.append(ok.astype(f32))
    masks = jnp.stack(rows, axis=0)                            # (9, L)

    # Conv weights with the 9 taps folded into the contraction dim (bf16 MXU feed).
    # Conv biases are NOT passed: train-mode BN mean subtraction cancels them.
    w1s = jnp.transpose(params["w1"], (2, 0, 1)).reshape(Cout, 9 * Cin)
    w1s = jnp.pad(w1s, ((0, Cp - Cout), (0, 0))).astype(bf16)        # (Cp, 9*Cin)
    w2t = jnp.pad(jnp.transpose(params["w2"], (2, 0, 1)),
                  ((0, 0), (0, 0), (0, Cp - Cout)))                  # (Cout, 9, Cp)
    w2s = w2t.reshape(Cout, 9 * Cp).astype(bf16)
    g1 = jnp.pad(params["g1"].reshape(-1), (0, Cp - Cout)).reshape(Cp, 1).astype(f32)
    be1 = jnp.pad(params["be1"].reshape(-1), (0, Cp - Cout)).reshape(Cp, 1).astype(f32)
    g2 = params["g2"].reshape(Cout, 1).astype(f32)
    be2 = params["be2"].reshape(Cout, 1).astype(f32)

    flops = 2 * Cp * 9 * Cin * L + 2 * Cout * 9 * Cp * L
    bytes_accessed = (4 * (x.size + masks.size + Cout * L)
                      + 2 * (w1s.size + w2s.size) + 4 * 2 * (Cp + Cout))

    vmem = pl.BlockSpec(memory_space=pltpu.MemorySpace.VMEM)
    out = pl.pallas_call(
        _make_conv_kernel(W2, L),
        out_shape=jax.ShapeDtypeStruct((Cout, L), f32),
        in_specs=[vmem] * 8,
        out_specs=vmem,
        compiler_params=pltpu.CompilerParams(vmem_limit_bytes=_vmem_limit_bytes()),
        cost_estimate=pl.CostEstimate(flops=int(flops),
                                      transcendentals=int(Cp + Cout),
                                      bytes_accessed=int(bytes_accessed)),
    )(x, masks, w1s, w2s, g1, be1, g2, be2)

    return jnp.transpose(out.reshape(Cout, N, H2, W2), (1, 0, 2, 3))


def init_params(key, in_channels, out_channels):
    k1, k2, k3, k4 = jax.random.split(key, 4)
    bound1 = 1.0 / (in_channels * 9) ** 0.5
    bound2 = 1.0 / (out_channels * 9) ** 0.5
    w1 = jax.random.uniform(k1, (9, in_channels, out_channels), jnp.float32,
                            -bound1, bound1)
    b1 = jax.random.uniform(k2, (1, out_channels), jnp.float32, -bound1, bound1)
    w2 = jax.random.uniform(k3, (9, out_channels, out_channels), jnp.float32,
                            -bound2, bound2)
    b2 = jax.random.uniform(k4, (1, out_channels), jnp.float32, -bound2, bound2)
    ones = jnp.ones((1, out_channels), jnp.float32)
    zeros = jnp.zeros((1, out_channels), jnp.float32)
    return dict(w1=w1, b1=b1, g1=ones, be1=zeros,
                w2=w2, b2=b2, g2=ones, be2=zeros)


# ----------------------------------------------------------------------------
# Pure-JAX reference (sanity check).  Conv inputs / weights are rounded to bf16
# (q) so it mirrors the kernel's bf16 MXU feed and the comparison stays tight;
# everything else (upsample, pad, BN, ReLU, bias) follows the PyTorch module.
# ----------------------------------------------------------------------------
def reference(x1_nchw, x2_nchw, params):
    hp = jax.lax.Precision.HIGHEST
    q = lambda a: jax.lax.convert_element_type(
        jax.lax.convert_element_type(a, jnp.bfloat16), jnp.float32)
    N, C1, Hi, Wi = x1_nchw.shape
    _, C2, H2, W2 = x2_nchw.shape
    ah = _bilinear_matrix(2 * Hi, Hi)
    aw = _bilinear_matrix(2 * Wi, Wi)
    xu = jnp.einsum("oh,nchw->ncow", ah, x1_nchw.astype(jnp.float32), precision=hp)
    xu = jnp.einsum("ncow,qw->ncoq", xu, aw, precision=hp)
    diffY = H2 - xu.shape[2]
    diffX = W2 - xu.shape[3]
    xu = jnp.pad(xu, ((0, 0), (0, 0),
                      (diffY // 2, diffY - diffY // 2),
                      (diffX // 2, diffX - diffX // 2)))
    x = jnp.concatenate([x2_nchw.astype(jnp.float32), xu], axis=1)

    def conv(x, w_kic, b):  # w_kic: (9, Cin, Cout) -> HWIO
        w = w_kic.reshape(3, 3, w_kic.shape[1], w_kic.shape[2])
        y = jax.lax.conv_general_dilated(
            q(x), q(w), (1, 1), ((1, 1), (1, 1)),
            dimension_numbers=("NCHW", "HWIO", "NCHW"), precision=hp)
        return y + b.reshape(1, -1, 1, 1)

    def bn_relu(y, g, be):
        mean = y.mean(axis=(0, 2, 3), keepdims=True)
        var = jnp.mean((y - mean) ** 2, axis=(0, 2, 3), keepdims=True)
        yn = (y - mean) / jnp.sqrt(var + EPS)
        return jnp.maximum(yn * g.reshape(1, -1, 1, 1) + be.reshape(1, -1, 1, 1), 0.0)

    y = bn_relu(conv(x, params["w1"], params["b1"]), params["g1"], params["be1"])
    y = bn_relu(conv(y, params["w2"], params["b2"]), params["g2"], params["be2"])
    return y


if __name__ == "__main__":
    key = jax.random.PRNGKey(0)
    kp, kx1, kx2 = jax.random.split(key, 3)

    in_channels, out_channels = 8, 4          # Up(8, 4, bilinear=True)
    N = 2
    # x1: low-res features to upsample; x2: skip connection from the encoder.
    x1 = jax.random.normal(kx1, (N, in_channels // 2, 8, 8), jnp.float32)
    x2 = jax.random.normal(kx2, (N, in_channels // 2, 16, 16), jnp.float32)

    params = init_params(kp, in_channels, out_channels)

    up = jax.jit(up_forward)
    out = jax.block_until_ready(up(x1, x2, params))
    assert out.shape == (N, out_channels, 16, 16), out.shape

    ref = jax.block_until_ready(reference(x1, x2, params))
    # Kernel uses bf16 MXU inputs (mirrored by q() in the reference); remaining
    # mismatch is accumulation order / one-pass BN noise, well under 5e-3.
    assert jnp.allclose(out, ref, atol=5e-3, rtol=5e-3), \
        float(jnp.max(jnp.abs(out - ref)))

    print("KERNEL_OK")
</pallas_src>

<mosaic_0001>
module attributes {stable_mosaic.version = 11 : i64} {
  func.func @_upsample_kernel(%arg0: i32, %arg1: memref<1x4x8x8xf32, #tpu.memory_space<vmem>>, %arg2: memref<4x16x8xf32, #tpu.memory_space<vmem>>, %arg3: memref<4x8x16xf32, #tpu.memory_space<vmem>>, %arg4: memref<4x16x16xf32, #tpu.memory_space<vmem>>) attributes {dimension_semantics = [#tpu.dimension_semantics<parallel>], iteration_bounds = array<i64: 2>, scalar_prefetch = 0 : i64, scratch_operands = 0 : i64, tpu.core_type = #tpu.core_type<tc>, window_params = [{transform_indices = @transform_0, window_bounds = array<i64: 1, 4, 8, 8>}, {pipeline_mode = #tpu.pipeline_mode<synchronous>, transform_indices = @transform_1, window_bounds = array<i64: 4, 16, 8>}, {pipeline_mode = #tpu.pipeline_mode<synchronous>, transform_indices = @transform_2, window_bounds = array<i64: 4, 8, 16>}, {transform_indices = @transform_3, window_bounds = array<i64: 4, 16, 16>}]} {
    %c0 = arith.constant 0 : index
    %c0_0 = arith.constant 0 : index
    %c0_1 = arith.constant 0 : index
    %0 = vector.load %arg2[%c0, %c0_0, %c0_1] : memref<4x16x8xf32, #tpu.memory_space<vmem>>, vector<4x16x8xf32>
    %c0_2 = arith.constant 0 : index
    %c0_3 = arith.constant 0 : index
    %c0_4 = arith.constant 0 : index
    %c0_5 = arith.constant 0 : index
    %1 = vector.load %arg1[%c0_2, %c0_3, %c0_4, %c0_5] : memref<1x4x8x8xf32, #tpu.memory_space<vmem>>, vector<1x4x8x8xf32>
    %2 = vector.shape_cast %1 : vector<1x4x8x8xf32> to vector<4x8x8xf32>
    "tpu.trace_start"() <{level = 10 : i32, message = "coh,chw->cow"}> : () -> ()
    %cst = arith.constant dense<0.000000e+00> : vector<4x16x8xf32>
    %3 = tpu.matmul %0, %2, %cst {dimension_numbers = #tpu.dot_dimension_numbers<[2], [1], [1], [2], [0, 0, 0, 1, 1, 2], [0], [0]>} : vector<4x16x8xf32>, vector<4x8x8xf32>, vector<4x16x8xf32> -> vector<4x16x8xf32>
    "tpu.trace_stop"() : () -> ()
    %c0_6 = arith.constant 0 : index
    %c0_7 = arith.constant 0 : index
    %c0_8 = arith.constant 0 : index
    %4 = vector.load %arg3[%c0_6, %c0_7, %c0_8] : memref<4x8x16xf32, #tpu.memory_space<vmem>>, vector<4x8x16xf32>
    "tpu.trace_start"() <{level = 10 : i32, message = "cow,cwq->coq"}> : () -> ()
    %cst_9 = arith.constant dense<0.000000e+00> : vector<4x16x16xf32>
    %5 = tpu.matmul %3, %4, %cst_9 {dimension_numbers = #tpu.dot_dimension_numbers<[2], [1], [1], [2], [0, 0, 0, 1, 1, 2], [0], [0]>} : vector<4x16x8xf32>, vector<4x8x16xf32>, vector<4x16x16xf32> -> vector<4x16x16xf32>
    "tpu.trace_stop"() : () -> ()
    %c0_10 = arith.constant 0 : index
    %c0_11 = arith.constant 0 : index
    %c0_12 = arith.constant 0 : index
    %6 = vector.load %arg4[%c0_10, %c0_11, %c0_12] : memref<4x16x16xf32, #tpu.memory_space<vmem>>, vector<4x16x16xf32>
    tpu.vector_store %arg4[%c0_10, %c0_11, %c0_12], %5 {strides = array<i32>} : memref<4x16x16xf32, #tpu.memory_space<vmem>>, vector<4x16x16xf32>,
    return
  }
  func.func @transform_0(%arg0: i32) -> (i32, i32, i32, i32) {
    %c0_i32 = arith.constant 0 : i32
    %c0_i32_0 = arith.constant 0 : i32
    %c0_i32_1 = arith.constant 0 : i32
    %c0_i32_2 = arith.constant 0 : i32
    return %arg0, %c0_i32, %c0_i32_0, %c0_i32_1 : i32, i32, i32, i32
  }
  func.func @transform_1(%arg0: i32) -> (i32, i32, i32) {
    %c0_i32 = arith.constant 0 : i32
    %c0_i32_0 = arith.constant 0 : i32
    %c0_i32_1 = arith.constant 0 : i32
    %c0_i32_2 = arith.constant 0 : i32
    return %c0_i32, %c0_i32_0, %c0_i32_1 : i32, i32, i32
  }
  func.func @transform_2(%arg0: i32) -> (i32, i32, i32) {
    %c0_i32 = arith.constant 0 : i32
    %c0_i32_0 = arith.constant 0 : i32
    %c0_i32_1 = arith.constant 0 : i32
    %c0_i32_2 = arith.constant 0 : i32
    return %c0_i32, %c0_i32_0, %c0_i32_1 : i32, i32, i32
  }
  func.func @transform_3(%arg0: i32) -> (i32, i32, i32) {
    %c0_i32 = arith.constant 0 : i32
    %c0_i32_0 = arith.constant 0 : i32
    %c0_i32_1 = arith.constant 0 : i32
    return %c0_i32, %arg0, %c0_i32_0 : i32, i32, i32
  }
}

module attributes {stable_mosaic.version = 11 : i64} {
  func.func @kernel(%arg0: memref<8x512xf32, #tpu.memory_space<vmem>>, %arg1: memref<9x512xf32, #tpu.memory_space<vmem>>, %arg2: memref<8x72xbf16, #tpu.memory_space<vmem>>, %arg3: memref<4x72xbf16, #tpu.memory_space<vmem>>, %arg4: memref<8x1xf32, #tpu.memory_space<vmem>>, %arg5: memref<8x1xf32, #tpu.memory_space<vmem>>, %arg6: memref<4x1xf32, #tpu.memory_space<vmem>>, %arg7: memref<4x1xf32, #tpu.memory_space<vmem>>, %arg8: memref<4x512xf32, #tpu.memory_space<vmem>>) attributes {dimension_semantics = [], scalar_prefetch = 0 : i64, scratch_operands = 0 : i64, tpu.core_type = #tpu.core_type<tc>} {
    %c0 = arith.constant 0 : index
    %c0_0 = arith.constant 0 : index
    %0 = vector.load %arg1[%c0, %c0_0] : memref<9x512xf32, #tpu.memory_space<vmem>>, vector<9x512xf32>
    %c0_1 = arith.constant 0 : index
    %c0_2 = arith.constant 0 : index
    %1 = vector.load %arg2[%c0_1, %c0_2] : memref<8x72xbf16, #tpu.memory_space<vmem>>, vector<8x72xbf16>
    %c0_3 = arith.constant 0 : index
    %c0_4 = arith.constant 0 : index
    %2 = vector.load %arg0[%c0_3, %c0_4] : memref<8x512xf32, #tpu.memory_space<vmem>>, vector<8x512xf32>
    %c17_i32 = arith.constant 17 : i32
    %3 = tpu.dynamic_rotate %2 by %c17_i32 dim 1 : vector<8x512xf32>, i32 -> vector<8x512xf32>
    %4 = vector.extract_strided_slice %0 {offsets = [0, 0], sizes = [1, 512], strides = [1, 1]} : vector<9x512xf32> to vector<1x512xf32>
    %5 = vector.broadcast %4 : vector<1x512xf32> to vector<8x512xf32>
    %6 = arith.mulf %3, %5 : vector<8x512xf32>
    %c16_i32 = arith.constant 16 : i32
    %7 = tpu.dynamic_rotate %2 by %c16_i32 dim 1 : vector<8x512xf32>, i32 -> vector<8x512xf32>
    %8 = vector.extract_strided_slice %0 {offsets = [1, 0], sizes = [1, 512], strides = [1, 1]} : vector<9x512xf32> to vector<1x512xf32>
    %9 = vector.broadcast %8 : vector<1x512xf32> to vector<8x512xf32>
    %10 = arith.mulf %7, %9 : vector<8x512xf32>
    %c15_i32 = arith.constant 15 : i32
    %11 = tpu.dynamic_rotate %2 by %c15_i32 dim 1 : vector<8x512xf32>, i32 -> vector<8x512xf32>
    %12 = vector.extract_strided_slice %0 {offsets = [2, 0], sizes = [1, 512], strides = [1, 1]} : vector<9x512xf32> to vector<1x512xf32>
    %13 = vector.broadcast %12 : vector<1x512xf32> to vector<8x512xf32>
    %14 = arith.mulf %11, %13 : vector<8x512xf32>
    %c1_i32 = arith.constant 1 : i32
    %15 = tpu.dynamic_rotate %2 by %c1_i32 dim 1 : vector<8x512xf32>, i32 -> vector<8x512xf32>
    %16 = vector.extract_strided_slice %0 {offsets = [3, 0], sizes = [1, 512], strides = [1, 1]} : vector<9x512xf32> to vector<1x512xf32>
    %17 = vector.broadcast %16 : vector<1x512xf32> to vector<8x512xf32>
    %18 = arith.mulf %15, %17 : vector<8x512xf32>
    %c511_i32 = arith.constant 511 : i32
    %19 = tpu.dynamic_rotate %2 by %c511_i32 dim 1 : vector<8x512xf32>, i32 -> vector<8x512xf32>
    %20 = vector.extract_strided_slice %0 {offsets = [5, 0], sizes = [1, 512], strides = [1, 1]} : vector<9x512xf32> to vector<1x512xf32>
    %21 = vector.broadcast %20 : vector<1x512xf32> to vector<8x512xf32>
    %22 = arith.mulf %19, %21 : vector<8x512xf32>
    %c497_i32 = arith.constant 497 : i32
    %23 = tpu.dynamic_rotate %2 by %c497_i32 dim 1 : vector<8x512xf32>, i32 -> vector<8x512xf32>
    %24 = vector.extract_strided_slice %0 {offsets = [6, 0], sizes = [1, 512], strides = [1, 1]} : vector<9x512xf32> to vector<1x512xf32>
    %25 = vector.broadcast %24 : vector<1x512xf32> to vector<8x512xf32>
    %26 = arith.mulf %23, %25 : vector<8x512xf32>
    %c496_i32 = arith.constant 496 : i32
    %27 = tpu.dynamic_rotate %2 by %c496_i32 dim 1 : vector<8x512xf32>, i32 -> vector<8x512xf32>
    %28 = vector.extract_strided_slice %0 {offsets = [7, 0], sizes = [1, 512], strides = [1, 1]} : vector<9x512xf32> to vector<1x512xf32>
    %29 = vector.broadcast %28 : vector<1x512xf32> to vector<8x512xf32>
    %30 = arith.mulf %27, %29 : vector<8x512xf32>
    %c495_i32 = arith.constant 495 : i32
    %31 = tpu.dynamic_rotate %2 by %c495_i32 dim 1 : vector<8x512xf32>, i32 -> vector<8x512xf32>
    %32 = vector.extract_strided_slice %0 {offsets = [8, 0], sizes = [1, 512], strides = [1, 1]} : vector<9x512xf32> to vector<1x512xf32>
    %33 = vector.broadcast %32 : vector<1x512xf32> to vector<8x512xf32>
    %34 = arith.mulf %31, %33 : vector<8x512xf32>
    %35 = tpu.concatenate %6, %10, %14, %18, %2, %22, %26, %30, %34 in 0 : vector<8x512xf32>, vector<8x512xf32>, vector<8x512xf32>, vector<8x512xf32>, vector<8x512xf32>, vector<8x512xf32>, vector<8x512xf32>, vector<8x512xf32>, vector<8x512xf32> -> vector<72x512xf32>
    %36 = arith.truncf %35 : vector<72x512xf32> to vector<72x512xbf16>
    %cst = arith.constant dense<0.000000e+00> : vector<8x512xf32>
    %37 = tpu.matmul %1, %36, %cst {dimension_numbers = #tpu.dot_dimension_numbers<[1], [0], [0], [1], [0, 0, 1, 1], [], []>} : vector<8x72xbf16>, vector<72x512xbf16>, vector<8x512xf32> -> vector<8x512xf32>
    %c0_5 = arith.constant 0 : index
    %c0_6 = arith.constant 0 : index
    %38 = vector.load %arg4[%c0_5, %c0_6] : memref<8x1xf32, #tpu.memory_space<vmem>>, vector<8x1xf32>
    %c0_7 = arith.constant 0 : index
    %c0_8 = arith.constant 0 : index
    %39 = vector.load %arg5[%c0_7, %c0_8] : memref<8x1xf32, #tpu.memory_space<vmem>>, vector<8x1xf32>
    %cst_9 = arith.constant dense<0.000000e+00> : vector<8xf32>
    %40 = vector.multi_reduction <add>, %37, %cst_9 [1] : vector<8x512xf32> to vector<8xf32>
    %41 = vector.shape_cast %40 : vector<8xf32> to vector<8x1xf32>
    %42 = arith.mulf %37, %37 : vector<8x512xf32>
    %cst_10 = arith.constant dense<0.000000e+00> : vector<8xf32>
    %43 = vector.multi_reduction <add>, %42, %cst_10 [1] : vector<8x512xf32> to vector<8xf32>
    %44 = vector.shape_cast %43 : vector<8xf32> to vector<8x1xf32>
    %cst_11 = arith.constant 0.001953125 : f32
    %45 = vector.broadcast %cst_11 : f32 to vector<8x1xf32>
    %46 = arith.mulf %41, %45 : vector<8x1xf32>
    %cst_12 = arith.constant 0.001953125 : f32
    %47 = vector.broadcast %cst_12 : f32 to vector<8x1xf32>
    %48 = arith.mulf %44, %47 : vector<8x1xf32>
    %49 = arith.mulf %46, %46 : vector<8x1xf32>
    %50 = arith.subf %48, %49 : vector<8x1xf32>
    %cst_13 = arith.constant 9.99999974E-6 : f32
    %51 = vector.broadcast %cst_13 : f32 to vector<8x1xf32>
    %52 = arith.addf %50, %51 : vector<8x1xf32>
    %53 = math.rsqrt %52 : vector<8x1xf32>
    %54 = arith.mulf %38, %53 : vector<8x1xf32>
    %55 = arith.mulf %46, %54 : vector<8x1xf32>
    %56 = arith.subf %39, %55 : vector<8x1xf32>
    %57 = vector.broadcast %54 : vector<8x1xf32> to vector<8x512xf32>
    %58 = arith.mulf %37, %57 : vector<8x512xf32>
    %59 = vector.broadcast %56 : vector<8x1xf32> to vector<8x512xf32>
    %60 = arith.addf %58, %59 : vector<8x512xf32>
    %cst_14 = arith.constant 0.000000e+00 : f32
    %61 = vector.broadcast %cst_14 : f32 to vector<8x512xf32>
    %62 = arith.maximumf %60, %61 : vector<8x512xf32>
    %c0_15 = arith.constant 0 : index
    %c0_16 = arith.constant 0 : index
    %63 = vector.load %arg3[%c0_15, %c0_16] : memref<4x72xbf16, #tpu.memory_space<vmem>>, vector<4x72xbf16>
    %c17_i32_17 = arith.constant 17 : i32
    %64 = tpu.dynamic_rotate %62 by %c17_i32_17 dim 1 : vector<8x512xf32>, i32 -> vector<8x512xf32>
    %65 = vector.extract_strided_slice %0 {offsets = [0, 0], sizes = [1, 512], strides = [1, 1]} : vector<9x512xf32> to vector<1x512xf32>
    %66 = vector.broadcast %65 : vector<1x512xf32> to vector<8x512xf32>
    %67 = arith.mulf %64, %66 : vector<8x512xf32>
    %c16_i32_18 = arith.constant 16 : i32
    %68 = tpu.dynamic_rotate %62 by %c16_i32_18 dim 1 : vector<8x512xf32>, i32 -> vector<8x512xf32>
    %69 = vector.extract_strided_slice %0 {offsets = [1, 0], sizes = [1, 512], strides = [1, 1]} : vector<9x512xf32> to vector<1x512xf32>
    %70 = vector.broadcast %69 : vector<1x512xf32> to vector<8x512xf32>
    %71 = arith.mulf %68, %70 : vector<8x512xf32>
    %c15_i32_19 = arith.constant 15 : i32
    %72 = tpu.dynamic_rotate %62 by %c15_i32_19 dim 1 : vector<8x512xf32>, i32 -> vector<8x512xf32>
    %73 = vector.extract_strided_slice %0 {offsets = [2, 0], sizes = [1, 512], strides = [1, 1]} : vector<9x512xf32> to vector<1x512xf32>
    %74 = vector.broadcast %73 : vector<1x512xf32> to vector<8x512xf32>
    %75 = arith.mulf %72, %74 : vector<8x512xf32>
    %c1_i32_20 = arith.constant 1 : i32
    %76 = tpu.dynamic_rotate %62 by %c1_i32_20 dim 1 : vector<8x512xf32>, i32 -> vector<8x512xf32>
    %77 = vector.extract_strided_slice %0 {offsets = [3, 0], sizes = [1, 512], strides = [1, 1]} : vector<9x512xf32> to vector<1x512xf32>
    %78 = vector.broadcast %77 : vector<1x512xf32> to vector<8x512xf32>
    %79 = arith.mulf %76, %78 : vector<8x512xf32>
    %c511_i32_21 = arith.constant 511 : i32
    %80 = tpu.dynamic_rotate %62 by %c511_i32_21 dim 1 : vector<8x512xf32>, i32 -> vector<8x512xf32>
    %81 = vector.extract_strided_slice %0 {offsets = [5, 0], sizes = [1, 512], strides = [1, 1]} : vector<9x512xf32> to vector<1x512xf32>
    %82 = vector.broadcast %81 : vector<1x512xf32> to vector<8x512xf32>
    %83 = arith.mulf %80, %82 : vector<8x512xf32>
    %c497_i32_22 = arith.constant 497 : i32
    %84 = tpu.dynamic_rotate %62 by %c497_i32_22 dim 1 : vector<8x512xf32>, i32 -> vector<8x512xf32>
    %85 = vector.extract_strided_slice %0 {offsets = [6, 0], sizes = [1, 512], strides = [1, 1]} : vector<9x512xf32> to vector<1x512xf32>
    %86 = vector.broadcast %85 : vector<1x512xf32> to vector<8x512xf32>
    %87 = arith.mulf %84, %86 : vector<8x512xf32>
    %c496_i32_23 = arith.constant 496 : i32
    %88 = tpu.dynamic_rotate %62 by %c496_i32_23 dim 1 : vector<8x512xf32>, i32 -> vector<8x512xf32>
    %89 = vector.extract_strided_slice %0 {offsets = [7, 0], sizes = [1, 512], strides = [1, 1]} : vector<9x512xf32> to vector<1x512xf32>
    %90 = vector.broadcast %89 : vector<1x512xf32> to vector<8x512xf32>
    %91 = arith.mulf %88, %90 : vector<8x512xf32>
    %c495_i32_24 = arith.constant 495 : i32
    %92 = tpu.dynamic_rotate %62 by %c495_i32_24 dim 1 : vector<8x512xf32>, i32 -> vector<8x512xf32>
    %93 = vector.extract_strided_slice %0 {offsets = [8, 0], sizes = [1, 512], strides = [1, 1]} : vector<9x512xf32> to vector<1x512xf32>
    %94 = vector.broadcast %93 : vector<1x512xf32> to vector<8x512xf32>
    %95 = arith.mulf %92, %94 : vector<8x512xf32>
    %96 = tpu.concatenate %67, %71, %75, %79, %62, %83, %87, %91, %95 in 0 : vector<8x512xf32>, vector<8x512xf32>, vector<8x512xf32>, vector<8x512xf32>, vector<8x512xf32>, vector<8x512xf32>, vector<8x512xf32>, vector<8x512xf32>, vector<8x512xf32> -> vector<72x512xf32>
    %97 = arith.truncf %96 : vector<72x512xf32> to vector<72x512xbf16>
    %cst_25 = arith.constant dense<0.000000e+00> : vector<4x512xf32>
    %98 = tpu.matmul %63, %97, %cst_25 {dimension_numbers = #tpu.dot_dimension_numbers<[1], [0], [0], [1], [0, 0, 1, 1], [], []>} : vector<4x72xbf16>, vector<72x512xbf16>, vector<4x512xf32> -> vector<4x512xf32>
    %c0_26 = arith.constant 0 : index
    %c0_27 = arith.constant 0 : index
    %99 = vector.load %arg6[%c0_26, %c0_27] : memref<4x1xf32, #tpu.memory_space<vmem>>, vector<4x1xf32>
    %c0_28 = arith.constant 0 : index
    %c0_29 = arith.constant 0 : index
    %100 = vector.load %arg7[%c0_28, %c0_29] : memref<4x1xf32, #tpu.memory_space<vmem>>, vector<4x1xf32>
    %cst_30 = arith.constant dense<0.000000e+00> : vector<4xf32>
    %101 = vector.multi_reduction <add>, %98, %cst_30 [1] : vector<4x512xf32> to vector<4xf32>
    %102 = vector.shape_cast %101 : vector<4xf32> to vector<4x1xf32>
    %103 = arith.mulf %98, %98 : vector<4x512xf32>
    %cst_31 = arith.constant dense<0.000000e+00> : vector<4xf32>
    %104 = vector.multi_reduction <add>, %103, %cst_31 [1] : vector<4x512xf32> to vector<4xf32>
    %105 = vector.shape_cast %104 : vector<4xf32> to vector<4x1xf32>
    %cst_32 = arith.constant 0.001953125 : f32
    %106 = vector.broadcast %cst_32 : f32 to vector<4x1xf32>
    %107 = arith.mulf %102, %106 : vector<4x1xf32>
    %cst_33 = arith.constant 0.001953125 : f32
    %108 = vector.broadcast %cst_33 : f32 to vector<4x1xf32>
    %109 = arith.mulf %105, %108 : vector<4x1xf32>
    %110 = arith.mulf %107, %107 : vector<4x1xf32>
    %111 = arith.subf %109, %110 : vector<4x1xf32>
    %cst_34 = arith.constant 9.99999974E-6 : f32
    %112 = vector.broadcast %cst_34 : f32 to vector<4x1xf32>
    %113 = arith.addf %111, %112 : vector<4x1xf32>
    %114 = math.rsqrt %113 : vector<4x1xf32>
    %115 = arith.mulf %99, %114 : vector<4x1xf32>
    %116 = arith.mulf %107, %115 : vector<4x1xf32>
    %117 = arith.subf %100, %116 : vector<4x1xf32>
    %118 = vector.broadcast %115 : vector<4x1xf32> to vector<4x512xf32>
    %119 = arith.mulf %98, %118 : vector<4x512xf32>
    %120 = vector.broadcast %117 : vector<4x1xf32> to vector<4x512xf32>
    %121 = arith.addf %119, %120 : vector<4x512xf32>
    %cst_35 = arith.constant 0.000000e+00 : f32
    %122 = vector.broadcast %cst_35 : f32 to vector<4x512xf32>
    %123 = arith.maximumf %121, %122 : vector<4x512xf32>
    %c0_36 = arith.constant 0 : index
    %c0_37 = arith.constant 0 : index
    %124 = vector.load %arg8[%c0_36, %c0_37] : memref<4x512xf32, #tpu.memory_space<vmem>>, vector<4x512xf32>
    tpu.vector_store %arg8[%c0_36, %c0_37], %123 {strides = array<i32>} : memref<4x512xf32, #tpu.memory_space<vmem>>, vector<4x512xf32>,
    return
  }
}

</mosaic_0001>

<llo_original>
// kernel: up_forward.2
$region0: #{up_forward.2}
  #allocation0 [shape = 'u32[]', space=smem, size = 0x4, offset = 0x4, fixed_abs, tag = 'smem constant byte address 0x4 - core index']
  #allocation1 [shape = 'u32[144,128]{1,0:T(1,128)}', space=vmem, size = 0x12000, scoped, tag = 'internal scratch']
  %s0 = inlined_call_operand.vmem [shape: f32[2,4,8,8], index: 0, kind: input, shape index: {}]
  %s1 = inlined_call_operand.vmem [shape: f32[4,16,8], index: 1, kind: input, shape index: {}]
  %s2 = inlined_call_operand.vmem [shape: f32[4,8,16], index: 2, kind: input, shape index: {}]
  %s3 = inlined_call_operand.vmem [shape: f32[4,32,16], index: 3, kind: output, shape index: {}]
  %s4 = sld [smem:[#allocation0]]
  $region79: #{up_forward.2} parent=0
    _
  %s6 = ssub.s32 1, %s4
  %s7 = scalar_select 0, %s6, %s4
  $region1: #{up_forward.2} parent=0
    #allocation2 [shape = 'u8[65536]{0}', space=vmem, size = 0x10000, scoped, tag = 'output window, operand 0']
    loop: start=0, step=1, limit=4
    $region2: #{up_forward.2} parent=1 // loop_pre_header
      _
    $region3: #{up_forward.2} parent=1 // loop_header
      %s9 = sphi 0, %s13
      %p10 = scmp.ge.s32.totalorder %s9, 4
      %s19 = sphi 0, %s21
      %s22 = sphi 0, %s19
      %s23 = sphi 0, %s22
      %s39 = sphi 0, %s23
      %s43 = sphi 0, %s43
      %s45 = sphi 0, %s43
      %s46 = sphi 0, %s45
      %s60 = sphi 0, %s46
      %s64 = sphi 0, %s64
      %s66 = sphi 0, %s64
      %s67 = sphi 0, %s66
      %s81 = sphi 0, %s67
      %s87 = sphi 0, %s89
      %s90 = sphi 0, %s87
      %s91 = sphi 0, %s90
      %s107 = sphi 0, %s91
    $region4: #{up_forward.2} parent=1 // loop_header_branch
      %12 = sbr.rel (%p10) target = $region8
    $region5: #{up_forward.2} parent=1 // loop_body
      %s14 = ssub.s32 %s9, 1
      %s15 = ssub.s32 %s9, 2
      %s16 = sadd.s32 %s9, 1
      %s17 = ssub.s32 %s9, %s16
      %p18 = scmp.eq.s32.totalorder %s17, 0
      %s20 = sadd.s32 %s19, 1
      %s21 = scalar_select %p18, %s19, %s20
      %p24 = pneg %p18
      %p25 = scmp.eq.s32.totalorder %s9, 1
      %p26 = por %p24, %p25
      %p27 = scmp.ne.s32.totalorder %s19, %s22
      %p28 = scmp.eq.s32.totalorder %s9, 0
      %p29 = por %p27, %p28
      %p30 = scmp.ne.s32.totalorder %s19, %s22
      %p31 = scmp.eq.s32.totalorder %s14, 1
      %p32 = por %p30, %p31
      %p33 = scmp.ne.s32.totalorder %s22, %s23
      %p34 = scmp.eq.s32.totalorder %s14, 0
      %p35 = por %p33, %p34
      %p36 = scmp.ne.s32.totalorder %s22, %s23
      %p37 = scmp.eq.s32.totalorder %s15, 1
      %p38 = por %p36, %p37
      %p40 = scmp.ne.s32.totalorder %s23, %s39
      %p41 = scmp.eq.s32.totalorder %s15, 0
      %p42 = por %p40, %p41
      %s44 = sadd.s32 %s43, 1
      %p47 = scmp.eq.s32.totalorder %s9, 1
      %p48 = scmp.ne.s32.totalorder %s43, %s45
      %p49 = scmp.eq.s32.totalorder %s9, 0
      %p50 = por %p48, %p49
      %p51 = scmp.ne.s32.totalorder %s43, %s45
      %p52 = scmp.eq.s32.totalorder %s14, 1
      %p53 = por %p51, %p52
      %p54 = scmp.ne.s32.totalorder %s45, %s46
      %p55 = scmp.eq.s32.totalorder %s14, 0
      %p56 = por %p54, %p55
      %p57 = scmp.ne.s32.totalorder %s45, %s46
      %p58 = scmp.eq.s32.totalorder %s15, 1
      %p59 = por %p57, %p58
      %p61 = scmp.ne.s32.totalorder %s46, %s60
      %p62 = scmp.eq.s32.totalorder %s15, 0
      %p63 = por %p61, %p62
      %s65 = sadd.s32 %s64, 1
      %p68 = scmp.eq.s32.totalorder %s9, 1
      %p69 = scmp.ne.s32.totalorder %s64, %s66
      %p70 = scmp.eq.s32.totalorder %s9, 0
      %p71 = por %p69, %p70
      %p72 = scmp.ne.s32.totalorder %s64, %s66
      %p73 = scmp.eq.s32.totalorder %s14, 1
      %p74 = por %p72, %p73
      %p75 = scmp.ne.s32.totalorder %s66, %s67
      %p76 = scmp.eq.s32.totalorder %s14, 0
      %p77 = por %p75, %p76
      %p78 = scmp.ne.s32.totalorder %s66, %s67
      %p79 = scmp.eq.s32.totalorder %s15, 1
      %p80 = por %p78, %p79
      %p82 = scmp.ne.s32.totalorder %s67, %s81
      %p83 = scmp.eq.s32.totalorder %s15, 0
      %p84 = por %p82, %p83
      %s85 = ssub.s32 %s9, %s16
      %p86 = scmp.eq.s32.totalorder %s85, 0
      %s88 = sadd.s32 %s87, 1
      %s89 = scalar_select %p86, %s87, %s88
      %p92 = pneg %p86
      %p93 = scmp.eq.s32.totalorder %s9, 1
      %p94 = por %p92, %p93
      %p95 = scmp.ne.s32.totalorder %s87, %s90
      %p96 = scmp.eq.s32.totalorder %s9, 0
      %p97 = por %p95, %p96
      %p98 = scmp.ne.s32.totalorder %s87, %s90
      %p99 = scmp.eq.s32.totalorder %s14, 1
      %p100 = por %p98, %p99
      %p101 = scmp.ne.s32.totalorder %s90, %s91
      %p102 = scmp.eq.s32.totalorder %s14, 0
      %p103 = por %p101, %p102
      %p104 = scmp.ne.s32.totalorder %s90, %s91
      %p105 = scmp.eq.s32.totalorder %s15, 1
      %p106 = por %p104, %p105
      %p108 = scmp.ne.s32.totalorder %s91, %s107
      %p109 = scmp.eq.s32.totalorder %s15, 0
      %p110 = por %p108, %p109
      %p111 = scmp.le.s32.totalorder 1, %s9
      %p112 = scmp.lt.s32.totalorder %s9, 3
      %p113 = pnand %p111, %p112
      %p114 = pneg %p113
      // Predicated region
      $region9: #{up_forward.2} parent=5 // pred_check
        _
      $region10: #{up_forward.2} parent=5 // pred_check_branch
        %116 = sbr.rel (%p113) target = $region12
      $region11: #{up_forward.2} parent=5 // pred_region
        %s117 = ssub.s32 %s9, 1
        // Predicated region
        $region13: #{up_forward.2} parent=11 // pred_check
          %p118 = pneg %p56
        $region14: #{up_forward.2} parent=11 // pred_check_branch
          %120 = sbr.rel (%p118) target = $region16
        $region15: #{up_forward.2} parent=11 // pred_region
          _
        $region16: #{up_forward.2} parent=11 // pred_fallthru
          _
        // Predicated region
        $region17: #{up_forward.2} parent=11 // pred_check
          %p121 = pneg %p77
        $region18: #{up_forward.2} parent=11 // pred_check_branch
          %123 = sbr.rel (%p121) target = $region20
        $region19: #{up_forward.2} parent=11 // pred_region
          _
        $region20: #{up_forward.2} parent=11 // pred_fallthru
          _
      $region12: #{up_forward.2} parent=5 // pred_fallthru
        _
      %p124 = scmp.lt.s32.totalorder %s9, 2
      // Predicated region
      $region21: #{up_forward.2} parent=5 // pred_check
        %p125 = pneg %p124
      $region22: #{up_forward.2} parent=5 // pred_check_branch
        %127 = sbr.rel (%p125) target = $region24
      $region23: #{up_forward.2} parent=5 // pred_region
        // Predicated region
        $region25: #{up_forward.2} parent=23 // pred_check
          %p128 = pneg %p29
        $region26: #{up_forward.2} parent=23 // pred_check_branch
          %130 = sbr.rel (%p128) target = $region28
        $region27: #{up_forward.2} parent=23 // pred_region
          %p131 = scmp.lt.s32.totalorder %s9, 1
          %s132 = scalar_select %p131, %s9, 1
          %s133 = smul.addr %s132, 4
          %s134 = smul.addr %s133, 8
          %s135 = scalar_lea.vmem %s0, %s134
        $region28: #{up_forward.2} parent=23 // pred_fallthru
          _
      $region24: #{up_forward.2} parent=5 // pred_fallthru
        _
      %p136 = scmp.le.s32.totalorder 1, %s9
      %p137 = scmp.lt.s32.totalorder %s9, 3
      %p138 = pnand %p136, %p137
      %p139 = pneg %p138
      // Predicated region
      $region29: #{up_forward.2} parent=5 // pred_check
        _
      $region30: #{up_forward.2} parent=5 // pred_check_branch
        %141 = sbr.rel (%p138) target = $region32
      $region31: #{up_forward.2} parent=5 // pred_region
        %s142 = ssub.s32 %s9, 1
        %p143 = scmp.lt.s32.totalorder %s14, 1
        %s144 = scalar_select %p143, %s14, 1
        %s145 = smul.addr %s144, 4
        %s146 = smul.addr %s145, 8
        %s147 = scalar_lea.vmem %s0, %s146
        %p148 = pneg %p35
        %p149 = pneg %p32
        %p150 = pneg %p56
        %p151 = pneg %p53
        %p152 = pneg %p77
        %p153 = pneg %p74
        %p154 = pneg %p103
        %p155 = pneg %p100
        %s156 = sand.u32 %s90, 1
        %s157 = sand.u32 %s90, 1
        %s158 = smul.addr %s157, 64
        %s159 = scalar_lea.vmem [#allocation2], %s158
        %p160 = scmp.lt.s32.totalorder %s14, 1
        %s161 = scalar_select %p160, %s14, 1
        %s162 = smul.addr %s161, 4
        %s163 = smul.addr %s162, 8
        %s164 = scalar_lea.vmem %s0, %s163
        %s165 = smul.u32 2, %s14
        %v166 = vld [vmem:[%s1] sm:$0xff]
        %v167 = vld [vmem:[%s1 + $0x8] sm:$0xff]
        %v168 = vld [vmem:[%s1 + $0x10] sm:$0xff]
        %v169 = vld [vmem:[%s1 + $0x18] sm:$0xff]
        %v170 = vld [vmem:[%s1 + $0x20] sm:$0xff]
        %v171 = vld [vmem:[%s1 + $0x28] sm:$0xff]
        %v172 = vld [vmem:[%s1 + $0x30] sm:$0xff]
        %v173 = vld [vmem:[%s1 + $0x38] sm:$0xff]
        %v174 = vld [vmem:[%s164] sm:$0xff]
        %v175 = vld [vmem:[%s164 + $0x8] sm:$0xff]
        %v176 = vld [vmem:[%s164 + $0x10] sm:$0xff]
        %v177 = vld [vmem:[%s164 + $0x18] sm:$0xff]
        %vm178 = vcmask 64512
        %v180 = vsel %vm178, %v166, 0
        %v183 = vsel %vm178, %v167, 0
        %185 = vmatprep.subr.mxu0 0.0
        %186 = vmatpush1.msra.mxu0 %v174
        %187 = vmatprep.subr.mxu0 0.0
        %188 = vmatpush1.msra.mxu0 0.0
        %189 = vmatprep.subr.mxu0 0.0
        %190 = vmatpush1.msra.mxu0 0.0
        %191 = vmatprep.subr.mxu0 0.0
        %192 = vmatpush1.msra.mxu0 0.0
        %193 = vmatprep.subr.mxu0 0.0
        %194 = vmatpush1.msra.mxu0 0.0
        %195 = vmatprep.subr.mxu0 0.0
        %196 = vmatpush1.msra.mxu0 0.0
        %197 = vmatprep.subr.mxu0 0.0
        %198 = vmatpush1.msra.mxu0 0.0
        %199 = vmatprep.subr.mxu0 0.0
        %200 = vmatpush1.msra.mxu0 0.0
        %201 = vmatprep.subr.mxu0 0.0
        %202 = vmatpush1.msra.mxu0 0.0
        %203 = vmatprep.subr.mxu0 0.0
        %204 = vmatpush1.msra.mxu0 0.0
        %205 = vmatprep.subr.mxu0 0.0
        %206 = vmatpush1.msra.mxu0 0.0
        %207 = vmatprep.subr.mxu0 0.0
        %208 = vmatpush1.msra.mxu0 0.0
        %209 = vmatprep.subr.mxu0 0.0
        %210 = vmatpush1.msra.mxu0 0.0
        %211 = vmatprep.subr.mxu0 0.0
        %212 = vmatpush1.msra.mxu0 0.0
        %213 = vmatprep.subr.mxu0 0.0
        %214 = vmatpush1.msra.mxu0 0.0
        %215 = vmatprep.subr.mxu0 0.0
        %216 = vmatpush1.msra.mxu0 0.0
        %217 = vmatprep.subr.mxu0 0.0
        %218 = vmatpush1.msra.mxu0 0.0
        %219 = vmatprep.subr.mxu0 0.0
        %220 = vmatpush1.msra.mxu0 0.0
        %221 = vmatprep.subr.mxu0 0.0
        %222 = vmatpush1.msra.mxu0 0.0
        %223 = vmatprep.subr.mxu0 0.0
        %224 = vmatpush1.msra.mxu0 0.0
        %225 = vmatprep.subr.mxu0 0.0
        %226 = vmatpush1.msra.mxu0 0.0
        %227 = vmatprep.subr.mxu0 0.0
        %228 = vmatpush1.msra.mxu0 0.0
        %229 = vmatprep.subr.mxu0 0.0
        %230 = vmatpush1.msra.mxu0 0.0
        %231 = vmatprep.subr.mxu0 0.0
        %232 = vmatpush1.msra.mxu0 0.0
        %233 = vmatprep.subr.mxu0 0.0
        %234 = vmatpush1.msra.mxu0 0.0
        %235 = vmatprep.subr.mxu0 0.0
        %236 = vmatpush1.msra.mxu0 0.0
        %237 = vmatprep.subr.mxu0 0.0
        %238 = vmatpush1.msra.mxu0 0.0
        %239 = vmatprep.subr.mxu0 0.0
        %240 = vmatpush1.msra.mxu0 0.0
        %241 = vmatprep.subr.mxu0 0.0
        %242 = vmatpush1.msra.mxu0 0.0
        %243 = vmatprep.subr.mxu0 0.0
        %244 = vmatpush1.msra.mxu0 0.0
        %245 = vmatprep.subr.mxu0 0.0
        %246 = vmatpush1.msra.mxu0 0.0
        %247 = vmatprep.subr.mxu0 0.0
        %248 = vmatpush1.msra.mxu0 0.0
        %249 = vmatprep.mubr.f32.mxu0 0.0
        %250 = vmatmul.mubr.f32.gmra.mrb[0].mxu0 %v180
        %v251 = vpop.f32.mrb[0].mxu0
        %v252 = vadd.f32 0.0, %v251
        %v253 = vpop.f32.mrb[0].mxu0
        %254 = vmatprep.mubr.f32.mxu0 0.0
        %255 = vmatmul.mubr.f32.gmra.mrb[0].mxu0 %v183
        %v256 = vpop.f32.mrb[0].mxu0
        %v257 = vadd.f32 0.0, %v256
        %v258 = vpop.f32.mrb[0].mxu0
        %259 = vdwg.mxu0
        %v261 = vsel %vm178, %v168, 0
        %v264 = vsel %vm178, %v169, 0
        %266 = vmatprep.subr.mxu0 0.0
        %267 = vmatpush1.msra.mxu0 %v175
        %268 = vmatprep.subr.mxu0 0.0
        %269 = vmatpush1.msra.mxu0 0.0
        %270 = vmatprep.subr.mxu0 0.0
        %271 = vmatpush1.msra.mxu0 0.0
        %272 = vmatprep.subr.mxu0 0.0
        %273 = vmatpush1.msra.mxu0 0.0
        %274 = vmatprep.subr.mxu0 0.0
        %275 = vmatpush1.msra.mxu0 0.0
        %276 = vmatprep.subr.mxu0 0.0
        %277 = vmatpush1.msra.mxu0 0.0
        %278 = vmatprep.subr.mxu0 0.0
        %279 = vmatpush1.msra.mxu0 0.0
        %280 = vmatprep.subr.mxu0 0.0
        %281 = vmatpush1.msra.mxu0 0.0
        %282 = vmatprep.subr.mxu0 0.0
        %283 = vmatpush1.msra.mxu0 0.0
        %284 = vmatprep.subr.mxu0 0.0
        %285 = vmatpush1.msra.mxu0 0.0
        %286 = vmatprep.subr.mxu0 0.0
        %287 = vmatpush1.msra.mxu0 0.0
        %288 = vmatprep.subr.mxu0 0.0
        %289 = vmatpush1.msra.mxu0 0.0
        %290 = vmatprep.subr.mxu0 0.0
        %291 = vmatpush1.msra.mxu0 0.0
        %292 = vmatprep.subr.mxu0 0.0
        %293 = vmatpush1.msra.mxu0 0.0
        %294 = vmatprep.subr.mxu0 0.0
        %295 = vmatpush1.msra.mxu0 0.0
        %296 = vmatprep.subr.mxu0 0.0
        %297 = vmatpush1.msra.mxu0 0.0
        %298 = vmatprep.subr.mxu0 0.0
        %299 = vmatpush1.msra.mxu0 0.0
        %300 = vmatprep.subr.mxu0 0.0
        %301 = vmatpush1.msra.mxu0 0.0
        %302 = vmatprep.subr.mxu0 0.0
        %303 = vmatpush1.msra.mxu0 0.0
        %304 = vmatprep.subr.mxu0 0.0
        %305 = vmatpush1.msra.mxu0 0.0
        %306 = vmatprep.subr.mxu0 0.0
        %307 = vmatpush1.msra.mxu0 0.0
        %308 = vmatprep.subr.mxu0 0.0
        %309 = vmatpush1.msra.mxu0 0.0
        %310 = vmatprep.subr.mxu0 0.0
        %311 = vmatpush1.msra.mxu0 0.0
        %312 = vmatprep.subr.mxu0 0.0
        %313 = vmatpush1.msra.mxu0 0.0
        %314 = vmatprep.subr.mxu0 0.0
        %315 = vmatpush1.msra.mxu0 0.0
        %316 = vmatprep.subr.mxu0 0.0
        %317 = vmatpush1.msra.mxu0 0.0
        %318 = vmatprep.subr.mxu0 0.0
        %319 = vmatpush1.msra.mxu0 0.0
        %320 = vmatprep.subr.mxu0 0.0
        %321 = vmatpush1.msra.mxu0 0.0
        %322 = vmatprep.subr.mxu0 0.0
        %323 = vmatpush1.msra.mxu0 0.0
        %324 = vmatprep.subr.mxu0 0.0
        %325 = vmatpush1.msra.mxu0 0.0
        %326 = vmatprep.subr.mxu0 0.0
        %327 = vmatpush1.msra.mxu0 0.0
        %328 = vmatprep.subr.mxu0 0.0
        %329 = vmatpush1.msra.mxu0 0.0
        %330 = vmatprep.mubr.f32.mxu0 0.0
        %331 = vmatmul.mubr.f32.gmra.mrb[0].mxu0 %v261
        %v332 = vpop.f32.mrb[0].mxu0
        %v333 = vadd.f32 0.0, %v332
        %v334 = vpop.f32.mrb[0].mxu0
        %335 = vmatprep.mubr.f32.mxu0 0.0
        %336 = vmatmul.mubr.f32.gmra.mrb[0].mxu0 %v264
        %v337 = vpop.f32.mrb[0].mxu0
        %v338 = vadd.f32 0.0, %v337
        %v339 = vpop.f32.mrb[0].mxu0
        %340 = vdwg.mxu0
        %v342 = vsel %vm178, %v170, 0
        %v345 = vsel %vm178, %v171, 0
        %347 = vmatprep.subr.mxu0 0.0
        %348 = vmatpush1.msra.mxu0 %v176
        %349 = vmatprep.subr.mxu0 0.0
        %350 = vmatpush1.msra.mxu0 0.0
        %351 = vmatprep.subr.mxu0 0.0
        %352 = vmatpush1.msra.mxu0 0.0
        %353 = vmatprep.subr.mxu0 0.0
        %354 = vmatpush1.msra.mxu0 0.0
        %355 = vmatprep.subr.mxu0 0.0
        %356 = vmatpush1.msra.mxu0 0.0
        %357 = vmatprep.subr.mxu0 0.0
        %358 = vmatpush1.msra.mxu0 0.0
        %359 = vmatprep.subr.mxu0 0.0
        %360 = vmatpush1.msra.mxu0 0.0
        %361 = vmatprep.subr.mxu0 0.0
        %362 = vmatpush1.msra.mxu0 0.0
        %363 = vmatprep.subr.mxu0 0.0
        %364 = vmatpush1.msra.mxu0 0.0
        %365 = vmatprep.subr.mxu0 0.0
        %366 = vmatpush1.msra.mxu0 0.0
        %367 = vmatprep.subr.mxu0 0.0
        %368 = vmatpush1.msra.mxu0 0.0
        %369 = vmatprep.subr.mxu0 0.0
        %370 = vmatpush1.msra.mxu0 0.0
        %371 = vmatprep.subr.mxu0 0.0
        %372 = vmatpush1.msra.mxu0 0.0
        %373 = vmatprep.subr.mxu0 0.0
        %374 = vmatpush1.msra.mxu0 0.0
        %375 = vmatprep.subr.mxu0 0.0
        %376 = vmatpush1.msra.mxu0 0.0
        %377 = vmatprep.subr.mxu0 0.0
        %378 = vmatpush1.msra.mxu0 0.0
        %379 = vmatprep.subr.mxu0 0.0
        %380 = vmatpush1.msra.mxu0 0.0
        %381 = vmatprep.subr.mxu0 0.0
        %382 = vmatpush1.msra.mxu0 0.0
        %383 = vmatprep.subr.mxu0 0.0
        %384 = vmatpush1.msra.mxu0 0.0
        %385 = vmatprep.subr.mxu0 0.0
        %386 = vmatpush1.msra.mxu0 0.0
        %387 = vmatprep.subr.mxu0 0.0
        %388 = vmatpush1.msra.mxu0 0.0
        %389 = vmatprep.subr.mxu0 0.0
        %390 = vmatpush1.msra.mxu0 0.0
        %391 = vmatprep.subr.mxu0 0.0
        %392 = vmatpush1.msra.mxu0 0.0
        %393 = vmatprep.subr.mxu0 0.0
        %394 = vmatpush1.msra.mxu0 0.0
        %395 = vmatprep.subr.mxu0 0.0
        %396 = vmatpush1.msra.mxu0 0.0
        %397 = vmatprep.subr.mxu0 0.0
        %398 = vmatpush1.msra.mxu0 0.0
        %399 = vmatprep.subr.mxu0 0.0
        %400 = vmatpush1.msra.mxu0 0.0
        %401 = vmatprep.subr.mxu0 0.0
        %402 = vmatpush1.msra.mxu0 0.0
        %403 = vmatprep.subr.mxu0 0.0
        %404 = vmatpush1.msra.mxu0 0.0
        %405 = vmatprep.subr.mxu0 0.0
        %406 = vmatpush1.msra.mxu0 0.0
        %407 = vmatprep.subr.mxu0 0.0
        %408 = vmatpush1.msra.mxu0 0.0
        %409 = vmatprep.subr.mxu0 0.0
        %410 = vmatpush1.msra.mxu0 0.0
        %411 = vmatprep.mubr.f32.mxu0 0.0
        %412 = vmatmul.mubr.f32.gmra.mrb[0].mxu0 %v342
        %v413 = vpop.f32.mrb[0].mxu0
        %v414 = vadd.f32 0.0, %v413
        %v415 = vpop.f32.mrb[0].mxu0
        %416 = vmatprep.mubr.f32.mxu0 0.0
        %417 = vmatmul.mubr.f32.gmra.mrb[0].mxu0 %v345
        %v418 = vpop.f32.mrb[0].mxu0
        %v419 = vadd.f32 0.0, %v418
        %v420 = vpop.f32.mrb[0].mxu0
        %421 = vdwg.mxu0
        %v423 = vsel %vm178, %v172, 0
        %v426 = vsel %vm178, %v173, 0
        %428 = vmatprep.subr.mxu0 0.0
        %429 = vmatpush1.msra.mxu0 %v177
        %430 = vmatprep.subr.mxu0 0.0
        %431 = vmatpush1.msra.mxu0 0.0
        %432 = vmatprep.subr.mxu0 0.0
        %433 = vmatpush1.msra.mxu0 0.0
        %434 = vmatprep.subr.mxu0 0.0
        %435 = vmatpush1.msra.mxu0 0.0
        %436 = vmatprep.subr.mxu0 0.0
        %437 = vmatpush1.msra.mxu0 0.0
        %438 = vmatprep.subr.mxu0 0.0
        %439 = vmatpush1.msra.mxu0 0.0
        %440 = vmatprep.subr.mxu0 0.0
        %441 = vmatpush1.msra.mxu0 0.0
        %442 = vmatprep.subr.mxu0 0.0
        %443 = vmatpush1.msra.mxu0 0.0
        %444 = vmatprep.subr.mxu0 0.0
        %445 = vmatpush1.msra.mxu0 0.0
        %446 = vmatprep.subr.mxu0 0.0
        %447 = vmatpush1.msra.mxu0 0.0
        %448 = vmatprep.subr.mxu0 0.0
        %449 = vmatpush1.msra.mxu0 0.0
        %450 = vmatprep.subr.mxu0 0.0
        %451 = vmatpush1.msra.mxu0 0.0
        %452 = vmatprep.subr.mxu0 0.0
        %453 = vmatpush1.msra.mxu0 0.0
        %454 = vmatprep.subr.mxu0 0.0
        %455 = vmatpush1.msra.mxu0 0.0
        %456 = vmatprep.subr.mxu0 0.0
        %457 = vmatpush1.msra.mxu0 0.0
        %458 = vmatprep.subr.mxu0 0.0
        %459 = vmatpush1.msra.mxu0 0.0
        %460 = vmatprep.subr.mxu0 0.0
        %461 = vmatpush1.msra.mxu0 0.0
        %462 = vmatprep.subr.mxu0 0.0
        %463 = vmatpush1.msra.mxu0 0.0
        %464 = vmatprep.subr.mxu0 0.0
        %465 = vmatpush1.msra.mxu0 0.0
        %466 = vmatprep.subr.mxu0 0.0
        %467 = vmatpush1.msra.mxu0 0.0
        %468 = vmatprep.subr.mxu0 0.0
        %469 = vmatpush1.msra.mxu0 0.0
        %470 = vmatprep.subr.mxu0 0.0
        %471 = vmatpush1.msra.mxu0 0.0
        %472 = vmatprep.subr.mxu0 0.0
        %473 = vmatpush1.msra.mxu0 0.0
        %474 = vmatprep.subr.mxu0 0.0
        %475 = vmatpush1.msra.mxu0 0.0
        %476 = vmatprep.subr.mxu0 0.0
        %477 = vmatpush1.msra.mxu0 0.0
        %478 = vmatprep.subr.mxu0 0.0
        %479 = vmatpush1.msra.mxu0 0.0
        %480 = vmatprep.subr.mxu0 0.0
        %481 = vmatpush1.msra.mxu0 0.0
        %482 = vmatprep.subr.mxu0 0.0
        %483 = vmatpush1.msra.mxu0 0.0
        %484 = vmatprep.subr.mxu0 0.0
        %485 = vmatpush1.msra.mxu0 0.0
        %486 = vmatprep.subr.mxu0 0.0
        %487 = vmatpush1.msra.mxu0 0.0
        %488 = vmatprep.subr.mxu0 0.0
        %489 = vmatpush1.msra.mxu0 0.0
        %490 = vmatprep.subr.mxu0 0.0
        %491 = vmatpush1.msra.mxu0 0.0
        %492 = vmatprep.mubr.f32.mxu0 0.0
        %493 = vmatmul.mubr.f32.gmra.mrb[0].mxu0 %v423
        %v494 = vpop.f32.mrb[0].mxu0
        %v495 = vadd.f32 0.0, %v494
        %v496 = vpop.f32.mrb[0].mxu0
        %497 = vmatprep.mubr.f32.mxu0 0.0
        %498 = vmatmul.mubr.f32.gmra.mrb[0].mxu0 %v426
        %v499 = vpop.f32.mrb[0].mxu0
        %v500 = vadd.f32 0.0, %v499
        %v501 = vpop.f32.mrb[0].mxu0
        %502 = vdwg.mxu0
        %v503 = vld [vmem:[%s2] sm:$0xff]
        %v504 = vld [vmem:[%s2 + $0x8] sm:$0xff]
        %v505 = vld [vmem:[%s2 + $0x10] sm:$0xff]
        %v506 = vld [vmem:[%s2 + $0x18] sm:$0xff]
        %v508 = vsel %vm178, %v252, 0
        %v511 = vsel %vm178, %v257, 0
        %513 = vmatprep.subr.mxu0 0.0
        %514 = vmatpush1.msra.mxu0 %v503
        %515 = vmatprep.subr.mxu0 0.0
        %516 = vmatpush1.msra.mxu0 0.0
        %517 = vmatprep.subr.mxu0 0.0
        %518 = vmatpush1.msra.mxu0 0.0
        %519 = vmatprep.subr.mxu0 0.0
        %520 = vmatpush1.msra.mxu0 0.0
        %521 = vmatprep.subr.mxu0 0.0
        %522 = vmatpush1.msra.mxu0 0.0
        %523 = vmatprep.subr.mxu0 0.0
        %524 = vmatpush1.msra.mxu0 0.0
        %525 = vmatprep.subr.mxu0 0.0
        %526 = vmatpush1.msra.mxu0 0.0
        %527 = vmatprep.subr.mxu0 0.0
        %528 = vmatpush1.msra.mxu0 0.0
        %529 = vmatprep.subr.mxu0 0.0
        %530 = vmatpush1.msra.mxu0 0.0
        %531 = vmatprep.subr.mxu0 0.0
        %532 = vmatpush1.msra.mxu0 0.0
        %533 = vmatprep.subr.mxu0 0.0
        %534 = vmatpush1.msra.mxu0 0.0
        %535 = vmatprep.subr.mxu0 0.0
        %536 = vmatpush1.msra.mxu0 0.0
        %537 = vmatprep.subr.mxu0 0.0
        %538 = vmatpush1.msra.mxu0 0.0
        %539 = vmatprep.subr.mxu0 0.0
        %540 = vmatpush1.msra.mxu0 0.0
        %541 = vmatprep.subr.mxu0 0.0
        %542 = vmatpush1.msra.mxu0 0.0
        %543 = vmatprep.subr.mxu0 0.0
        %544 = vmatpush1.msra.mxu0 0.0
        %545 = vmatprep.subr.mxu0 0.0
        %546 = vmatpush1.msra.mxu0 0.0
        %547 = vmatprep.subr.mxu0 0.0
        %548 = vmatpush1.msra.mxu0 0.0
        %549 = vmatprep.subr.mxu0 0.0
        %550 = vmatpush1.msra.mxu0 0.0
        %551 = vmatprep.subr.mxu0 0.0
        %552 = vmatpush1.msra.mxu0 0.0
        %553 = vmatprep.subr.mxu0 0.0
        %554 = vmatpush1.msra.mxu0 0.0
        %555 = vmatprep.subr.mxu0 0.0
        %556 = vmatpush1.msra.mxu0 0.0
        %557 = vmatprep.subr.mxu0 0.0
        %558 = vmatpush1.msra.mxu0 0.0
        %559 = vmatprep.subr.mxu0 0.0
        %560 = vmatpush1.msra.mxu0 0.0
        %561 = vmatprep.subr.mxu0 0.0
        %562 = vmatpush1.msra.mxu0 0.0
        %563 = vmatprep.subr.mxu0 0.0
        %564 = vmatpush1.msra.mxu0 0.0
        %565 = vmatprep.subr.mxu0 0.0
        %566 = vmatpush1.msra.mxu0 0.0
        %567 = vmatprep.subr.mxu0 0.0
        %568 = vmatpush1.msra.mxu0 0.0
        %569 = vmatprep.subr.mxu0 0.0
        %570 = vmatpush1.msra.mxu0 0.0
        %571 = vmatprep.subr.mxu0 0.0
        %572 = vmatpush1.msra.mxu0 0.0
        %573 = vmatprep.subr.mxu0 0.0
        %574 = vmatpush1.msra.mxu0 0.0
        %575 = vmatprep.subr.mxu0 0.0
        %576 = vmatpush1.msra.mxu0 0.0
        %577 = vmatprep.mubr.f32.mxu0 0.0
        %578 = vmatmul.mubr.f32.gmra.mrb[0].mxu0 %v508
        %v579 = vpop.f32.mrb[0].mxu0
        %v580 = vadd.f32 0.0, %v579
        %v581 = vpop.f32.mrb[0].mxu0
        %582 = vmatprep.mubr.f32.mxu0 0.0
        %583 = vmatmul.mubr.f32.gmra.mrb[0].mxu0 %v511
        %v584 = vpop.f32.mrb[0].mxu0
        %v585 = vadd.f32 0.0, %v584
        %v586 = vpop.f32.mrb[0].mxu0
        %587 = vdwg.mxu0
        %v589 = vsel %vm178, %v333, 0
        %v592 = vsel %vm178, %v338, 0
        %594 = vmatprep.subr.mxu0 0.0
        %595 = vmatpush1.msra.mxu0 %v504
        %596 = vmatprep.subr.mxu0 0.0
        %597 = vmatpush1.msra.mxu0 0.0
        %598 = vmatprep.subr.mxu0 0.0
        %599 = vmatpush1.msra.mxu0 0.0
        %600 = vmatprep.subr.mxu0 0.0
        %601 = vmatpush1.msra.mxu0 0.0
        %602 = vmatprep.subr.mxu0 0.0
        %603 = vmatpush1.msra.mxu0 0.0
        %604 = vmatprep.subr.mxu0 0.0
        %605 = vmatpush1.msra.mxu0 0.0
        %606 = vmatprep.subr.mxu0 0.0
        %607 = vmatpush1.msra.mxu0 0.0
        %608 = vmatprep.subr.mxu0 0.0
        %609 = vmatpush1.msra.mxu0 0.0
        %610 = vmatprep.subr.mxu0 0.0
        %611 = vmatpush1.msra.mxu0 0.0
        %612 = vmatprep.subr.mxu0 0.0
        %613 = vmatpush1.msra.mxu0 0.0
        %614 = vmatprep.subr.mxu0 0.0
        %615 = vmatpush1.msra.mxu0 0.0
        %616 = vmatprep.subr.mxu0 0.0
        %617 = vmatpush1.msra.mxu0 0.0
        %618 = vmatprep.subr.mxu0 0.0
        %619 = vmatpush1.msra.mxu0 0.0
        %620 = vmatprep.subr.mxu0 0.0
        %621 = vmatpush1.msra.mxu0 0.0
        %622 = vmatprep.subr.mxu0 0.0
        %623 = vmatpush1.msra.mxu0 0.0
        %624 = vmatprep.subr.mxu0 0.0
        %625 = vmatpush1.msra.mxu0 0.0
        %626 = vmatprep.subr.mxu0 0.0
        %627 = vmatpush1.msra.mxu0 0.0
        %628 = vmatprep.subr.mxu0 0.0
        %629 = vmatpush1.msra.mxu0 0.0
        %630 = vmatprep.subr.mxu0 0.0
        %631 = vmatpush1.msra.mxu0 0.0
        %632 = vmatprep.subr.mxu0 0.0
        %633 = vmatpush1.msra.mxu0 0.0
        %634 = vmatprep.subr.mxu0 0.0
        %635 = vmatpush1.msra.mxu0 0.0
        %636 = vmatprep.subr.mxu0 0.0
        %637 = vmatpush1.msra.mxu0 0.0
        %638 = vmatprep.subr.mxu0 0.0
        %639 = vmatpush1.msra.mxu0 0.0
        %640 = vmatprep.subr.mxu0 0.0
        %641 = vmatpush1.msra.mxu0 0.0
        %642 = vmatprep.subr.mxu0 0.0
        %643 = vmatpush1.msra.mxu0 0.0
        %644 = vmatprep.subr.mxu0 0.0
        %645 = vmatpush1.msra.mxu0 0.0
        %646 = vmatprep.subr.mxu0 0.0
        %647 = vmatpush1.msra.mxu0 0.0
        %648 = vmatprep.subr.mxu0 0.0
        %649 = vmatpush1.msra.mxu0 0.0
        %650 = vmatprep.subr.mxu0 0.0
        %651 = vmatpush1.msra.mxu0 0.0
        %652 = vmatprep.subr.mxu0 0.0
        %653 = vmatpush1.msra.mxu0 0.0
        %654 = vmatprep.subr.mxu0 0.0
        %655 = vmatpush1.msra.mxu0 0.0
        %656 = vmatprep.subr.mxu0 0.0
        %657 = vmatpush1.msra.mxu0 0.0
        %658 = vmatprep.mubr.f32.mxu0 0.0
        %659 = vmatmul.mubr.f32.gmra.mrb[0].mxu0 %v589
        %v660 = vpop.f32.mrb[0].mxu0
        %v661 = vadd.f32 0.0, %v660
        %v662 = vpop.f32.mrb[0].mxu0
        %663 = vmatprep.mubr.f32.mxu0 0.0
        %664 = vmatmul.mubr.f32.gmra.mrb[0].mxu0 %v592
        %v665 = vpop.f32.mrb[0].mxu0
        %v666 = vadd.f32 0.0, %v665
        %v667 = vpop.f32.mrb[0].mxu0
        %668 = vdwg.mxu0
        %v670 = vsel %vm178, %v414, 0
        %v673 = vsel %vm178, %v419, 0
        %675 = vmatprep.subr.mxu0 0.0
        %676 = vmatpush1.msra.mxu0 %v505
        %677 = vmatprep.subr.mxu0 0.0
        %678 = vmatpush1.msra.mxu0 0.0
        %679 = vmatprep.subr.mxu0 0.0
        %680 = vmatpush1.msra.mxu0 0.0
        %681 = vmatprep.subr.mxu0 0.0
        %682 = vmatpush1.msra.mxu0 0.0
        %683 = vmatprep.subr.mxu0 0.0
        %684 = vmatpush1.msra.mxu0 0.0
        %685 = vmatprep.subr.mxu0 0.0
        %686 = vmatpush1.msra.mxu0 0.0
        %687 = vmatprep.subr.mxu0 0.0
        %688 = vmatpush1.msra.mxu0 0.0
        %689 = vmatprep.subr.mxu0 0.0
        %690 = vmatpush1.msra.mxu0 0.0
        %691 = vmatprep.subr.mxu0 0.0
        %692 = vmatpush1.msra.mxu0 0.0
        %693 = vmatprep.subr.mxu0 0.0
        %694 = vmatpush1.msra.mxu0 0.0
        %695 = vmatprep.subr.mxu0 0.0
        %696 = vmatpush1.msra.mxu0 0.0
        %697 = vmatprep.subr.mxu0 0.0
        %698 = vmatpush1.msra.mxu0 0.0
        %699 = vmatprep.subr.mxu0 0.0
        %700 = vmatpush1.msra.mxu0 0.0
        %701 = vmatprep.subr.mxu0 0.0
        %702 = vmatpush1.msra.mxu0 0.0
        %703 = vmatprep.subr.mxu0 0.0
        %704 = vmatpush1.msra.mxu0 0.0
        %705 = vmatprep.subr.mxu0 0.0
        %706 = vmatpush1.msra.mxu0 0.0
        %707 = vmatprep.subr.mxu0 0.0
        %708 = vmatpush1.msra.mxu0 0.0
        %709 = vmatprep.subr.mxu0 0.0
        %710 = vmatpush1.msra.mxu0 0.0
        %711 = vmatprep.subr.mxu0 0.0
        %712 = vmatpush1.msra.mxu0 0.0
        %713 = vmatprep.subr.mxu0 0.0
        %714 = vmatpush1.msra.mxu0 0.0
        %715 = vmatprep.subr.mxu0 0.0
        %716 = vmatpush1.msra.mxu0 0.0
        %717 = vmatprep.subr.mxu0 0.0
        %718 = vmatpush1.msra.mxu0 0.0
        %719 = vmatprep.subr.mxu0 0.0
        %720 = vmatpush1.msra.mxu0 0.0
        %721 = vmatprep.subr.mxu0 0.0
        %722 = vmatpush1.msra.mxu0 0.0
        %723 = vmatprep.subr.mxu0 0.0
        %724 = vmatpush1.msra.mxu0 0.0
        %725 = vmatprep.subr.mxu0 0.0
        %726 = vmatpush1.msra.mxu0 0.0
        %727 = vmatprep.subr.mxu0 0.0
        %728 = vmatpush1.msra.mxu0 0.0
        %729 = vmatprep.subr.mxu0 0.0
        %730 = vmatpush1.msra.mxu0 0.0
        %731 = vmatprep.subr.mxu0 0.0
        %732 = vmatpush1.msra.mxu0 0.0
        %733 = vmatprep.subr.mxu0 0.0
        %734 = vmatpush1.msra.mxu0 0.0
        %735 = vmatprep.subr.mxu0 0.0
        %736 = vmatpush1.msra.mxu0 0.0
        %737 = vmatprep.subr.mxu0 0.0
        %738 = vmatpush1.msra.mxu0 0.0
        %739 = vmatprep.mubr.f32.mxu0 0.0
        %740 = vmatmul.mubr.f32.gmra.mrb[0].mxu0 %v670
        %v741 = vpop.f32.mrb[0].mxu0
        %v742 = vadd.f32 0.0, %v741
        %v743 = vpop.f32.mrb[0].mxu0
        %744 = vmatprep.mubr.f32.mxu0 0.0
        %745 = vmatmul.mubr.f32.gmra.mrb[0].mxu0 %v673
        %v746 = vpop.f32.mrb[0].mxu0
        %v747 = vadd.f32 0.0, %v746
        %v748 = vpop.f32.mrb[0].mxu0
        %749 = vdwg.mxu0
        %v751 = vsel %vm178, %v495, 0
        %v754 = vsel %vm178, %v500, 0
        %756 = vmatprep.subr.mxu0 0.0
        %757 = vmatpush1.msra.mxu0 %v506
        %758 = vmatprep.subr.mxu0 0.0
        %759 = vmatpush1.msra.mxu0 0.0
        %760 = vmatprep.subr.mxu0 0.0
        %761 = vmatpush1.msra.mxu0 0.0
        %762 = vmatprep.subr.mxu0 0.0
        %763 = vmatpush1.msra.mxu0 0.0
        %764 = vmatprep.subr.mxu0 0.0
        %765 = vmatpush1.msra.mxu0 0.0
        %766 = vmatprep.subr.mxu0 0.0
        %767 = vmatpush1.msra.mxu0 0.0
        %768 = vmatprep.subr.mxu0 0.0
        %769 = vmatpush1.msra.mxu0 0.0
        %770 = vmatprep.subr.mxu0 0.0
        %771 = vmatpush1.msra.mxu0 0.0
        %772 = vmatprep.subr.mxu0 0.0
        %773 = vmatpush1.msra.mxu0 0.0
        %774 = vmatprep.subr.mxu0 0.0
        %775 = vmatpush1.msra.mxu0 0.0
        %776 = vmatprep.subr.mxu0 0.0
        %777 = vmatpush1.msra.mxu0 0.0
        %778 = vmatprep.subr.mxu0 0.0
        %779 = vmatpush1.msra.mxu0 0.0
        %780 = vmatprep.subr.mxu0 0.0
        %781 = vmatpush1.msra.mxu0 0.0
        %782 = vmatprep.subr.mxu0 0.0
        %783 = vmatpush1.msra.mxu0 0.0
        %784 = vmatprep.subr.mxu0 0.0
        %785 = vmatpush1.msra.mxu0 0.0
        %786 = vmatprep.subr.mxu0 0.0
        %787 = vmatpush1.msra.mxu0 0.0
        %788 = vmatprep.subr.mxu0 0.0
        %789 = vmatpush1.msra.mxu0 0.0
        %790 = vmatprep.subr.mxu0 0.0
        %791 = vmatpush1.msra.mxu0 0.0
        %792 = vmatprep.subr.mxu0 0.0
        %793 = vmatpush1.msra.mxu0 0.0
        %794 = vmatprep.subr.mxu0 0.0
        %795 = vmatpush1.msra.mxu0 0.0
        %796 = vmatprep.subr.mxu0 0.0
        %797 = vmatpush1.msra.mxu0 0.0
        %798 = vmatprep.subr.mxu0 0.0
        %799 = vmatpush1.msra.mxu0 0.0
        %800 = vmatprep.subr.mxu0 0.0
        %801 = vmatpush1.msra.mxu0 0.0
        %802 = vmatprep.subr.mxu0 0.0
        %803 = vmatpush1.msra.mxu0 0.0
        %804 = vmatprep.subr.mxu0 0.0
        %805 = vmatpush1.msra.mxu0 0.0
        %806 = vmatprep.subr.mxu0 0.0
        %807 = vmatpush1.msra.mxu0 0.0
        %808 = vmatprep.subr.mxu0 0.0
        %809 = vmatpush1.msra.mxu0 0.0
        %810 = vmatprep.subr.mxu0 0.0
        %811 = vmatpush1.msra.mxu0 0.0
        %812 = vmatprep.subr.mxu0 0.0
        %813 = vmatpush1.msra.mxu0 0.0
        %814 = vmatprep.subr.mxu0 0.0
        %815 = vmatpush1.msra.mxu0 0.0
        %816 = vmatprep.subr.mxu0 0.0
        %817 = vmatpush1.msra.mxu0 0.0
        %818 = vmatprep.subr.mxu0 0.0
        %819 = vmatpush1.msra.mxu0 0.0
        %820 = vmatprep.mubr.f32.mxu0 0.0
        %821 = vmatmul.mubr.f32.gmra.mrb[0].mxu0 %v751
        %v822 = vpop.f32.mrb[0].mxu0
        %v823 = vadd.f32 0.0, %v822
        %v824 = vpop.f32.mrb[0].mxu0
        %825 = vmatprep.mubr.f32.mxu0 0.0
        %826 = vmatmul.mubr.f32.gmra.mrb[0].mxu0 %v754
        %v827 = vpop.f32.mrb[0].mxu0
        %v828 = vadd.f32 0.0, %v827
        %v829 = vpop.f32.mrb[0].mxu0
        %830 = vdwg.mxu0
        %vm831 = vcmask 130048
        %832 = vst.msk [vmem:[%s159] sm:$0xff] %vm831, %v580
        %833 = vst.msk [vmem:[%s159 + $0x8] sm:$0xff] %vm831, %v585
        %834 = vst.msk [vmem:[%s159 + $0x10] sm:$0xff] %vm831, %v661
        %835 = vst.msk [vmem:[%s159 + $0x18] sm:$0xff] %vm831, %v666
        %836 = vst.msk [vmem:[%s159 + $0x20] sm:$0xff] %vm831, %v742
        %837 = vst.msk [vmem:[%s159 + $0x28] sm:$0xff] %vm831, %v747
        %838 = vst.msk [vmem:[%s159 + $0x30] sm:$0xff] %vm831, %v823
        %839 = vst.msk [vmem:[%s159 + $0x38] sm:$0xff] %vm831, %v828
        %s840 = sand.u32 %s90, 1
        %s841 = sand.u32 %s90, 1
        %s842 = smul.addr %s841, 64
        %s843 = scalar_lea.vmem [#allocation2], %s842
        // Predicated region
        $region33: #{up_forward.2} parent=31 // pred_check
          %p844 = pneg %p100
        $region34: #{up_forward.2} parent=31 // pred_check_branch
          %846 = sbr.rel (%p844) target = $region36
        $region35: #{up_forward.2} parent=31 // pred_region
          %s847 = smul.u32 2, %s14
          %s848 = smul.addr %s847, 8
          %s849 = scalar_lea.vmem %s3, %s848
          // Predicated region
          $region37: #{up_forward.2} parent=35 // pred_check
            _
          $region38: #{up_forward.2} parent=35 // pred_check_branch
            %851 = sbr.rel (0) target = $region40
          $region39: #{up_forward.2} parent=35 // pred_region
            // Predicated region
            $region41: #{up_forward.2} parent=39 // pred_check
              _
            $region42: #{up_forward.2} parent=39 // pred_check_branch
              %853 = sbr.rel (0) target = $region44
            $region43: #{up_forward.2} parent=39 // pred_region
              // Predicated region
              $region56: #{up_forward.2} parent=43 // pred_check
                _
              $region57: #{up_forward.2} parent=43 // pred_check_branch
                %882 = sbr.rel (0) target = $region59
              $region58: #{up_forward.2} parent=43 // pred_region
                loop: start=0, step=1, limit=1
                $region60: #{up_forward.2} parent=58 // loop_pre_header
                  _
                $region61: #{up_forward.2} parent=58 // loop_header
                  %s884 = sphi 0, %s888
                  %p885 = scmp.ge.s32.totalorder %s884, 1
                  %s889 = sphi %s843, %s843
                  %s890 = sphi %s849, %s849
                $region62: #{up_forward.2} parent=58 // loop_header_branch
                  %887 = sbr.rel (%p885) target = $region66
                $region63: #{up_forward.2} parent=58 // loop_body
                  %v891 = vld [vmem:[%s889] sm:$0xff]
                  %892 = vst [vmem:[%s890] sm:$0xff] %v891
                  %v893 = vld [vmem:[%s889 + $0x8] sm:$0xff]
                  %894 = vst [vmem:[%s890 + $0x8] sm:$0xff] %v893
                  %v895 = vld [vmem:[%s889 + $0x10] sm:$0xff]
                  %896 = vst [vmem:[%s890 + $0x20] sm:$0xff] %v895
                  %v897 = vld [vmem:[%s889 + $0x18] sm:$0xff]
                  %898 = vst [vmem:[%s890 + $0x28] sm:$0xff] %v897
                  %v899 = vld [vmem:[%s889 + $0x20] sm:$0xff]
                  %900 = vst [vmem:[%s890 + $0x40] sm:$0xff] %v899
                  %v901 = vld [vmem:[%s889 + $0x28] sm:$0xff]
                  %902 = vst [vmem:[%s890 + $0x48] sm:$0xff] %v901
                  %v903 = vld [vmem:[%s889 + $0x30] sm:$0xff]
                  %904 = vst [vmem:[%s890 + $0x60] sm:$0xff] %v903
                  %v905 = vld [vmem:[%s889 + $0x38] sm:$0xff]
                  %906 = vst [vmem:[%s890 + $0x68] sm:$0xff] %v905
                $region64: #{up_forward.2} parent=58 // loop_footer
                  %s888 = sadd.s32 1, %s884
                $region65: #{up_forward.2} parent=58 // loop_footer_branch
                  %883 = sbr.rel target = $region61
                $region66: #{up_forward.2} parent=58 // loop_exit
                  _
              $region59: #{up_forward.2} parent=43 // pred_fallthru
                _
              // Predicated region
              $region67: #{up_forward.2} parent=43 // pred_check
                _
              $region68: #{up_forward.2} parent=43 // pred_check_branch
                %908 = sbr.rel target = $region70
              $region69: #{up_forward.2} parent=43 // pred_region
                _
              $region70: #{up_forward.2} parent=43 // pred_fallthru
                _
            $region44: #{up_forward.2} parent=39 // pred_fallthru
              _
            // Predicated region
            $region45: #{up_forward.2} parent=39 // pred_check
              _
            $region46: #{up_forward.2} parent=39 // pred_check_branch
              %855 = sbr.rel target = $region48
            $region47: #{up_forward.2} parent=39 // pred_region
              loop: start=0, step=1, limit=1
              $region49: #{up_forward.2} parent=47 // loop_pre_header
                _
              $region50: #{up_forward.2} parent=47 // loop_header
                %s858 = sphi 0, %s862
                %p859 = scmp.ge.s32.totalorder %s858, 1
                %s863 = sphi %s843, %s843
                %s864 = sphi %s849, %s849
              $region51: #{up_forward.2} parent=47 // loop_header_branch
                %861 = sbr.rel (%p859) target = $region55
              $region52: #{up_forward.2} parent=47 // loop_body
                %v865 = vld [vmem:[%s863] sm:$0xff]
                %866 = vst [vmem:[%s864] sm:$0xff] %v865
                %v867 = vld [vmem:[%s863 + $0x8] sm:$0xff]
                %868 = vst [vmem:[%s864 + $0x8] sm:$0xff] %v867
                %v869 = vld [vmem:[%s863 + $0x10] sm:$0xff]
                %870 = vst [vmem:[%s864 + $0x20] sm:$0xff] %v869
                %v871 = vld [vmem:[%s863 + $0x18] sm:$0xff]
                %872 = vst [vmem:[%s864 + $0x28] sm:$0xff] %v871
                %v873 = vld [vmem:[%s863 + $0x20] sm:$0xff]
                %874 = vst [vmem:[%s864 + $0x40] sm:$0xff] %v873
                %v875 = vld [vmem:[%s863 + $0x28] sm:$0xff]
                %876 = vst [vmem:[%s864 + $0x48] sm:$0xff] %v875
                %v877 = vld [vmem:[%s863 + $0x30] sm:$0xff]
                %878 = vst [vmem:[%s864 + $0x60] sm:$0xff] %v877
                %v879 = vld [vmem:[%s863 + $0x38] sm:$0xff]
                %880 = vst [vmem:[%s864 + $0x68] sm:$0xff] %v879
              $region53: #{up_forward.2} parent=47 // loop_footer
                %s862 = sadd.s32 1, %s858
              $region54: #{up_forward.2} parent=47 // loop_footer_branch
                %857 = sbr.rel target = $region50
              $region55: #{up_forward.2} parent=47 // loop_exit
                _
            $region48: #{up_forward.2} parent=39 // pred_fallthru
              _
          $region40: #{up_forward.2} parent=35 // pred_fallthru
            _
          %909 = vnop
        $region36: #{up_forward.2} parent=31 // pred_fallthru
          _
      $region32: #{up_forward.2} parent=5 // pred_fallthru
        _
      %p910 = scmp.le.s32.totalorder 2, %s9
      // Predicated region
      $region71: #{up_forward.2} parent=5 // pred_check
        %p911 = pneg %p910
      $region72: #{up_forward.2} parent=5 // pred_check_branch
        %913 = sbr.rel (%p911) target = $region74
      $region73: #{up_forward.2} parent=5 // pred_region
        %s914 = ssub.s32 %s9, 2
        // Predicated region
        $region75: #{up_forward.2} parent=73 // pred_check
          %p915 = pneg %p106
        $region76: #{up_forward.2} parent=73 // pred_check_branch
          %917 = sbr.rel (%p915) target = $region78
        $region77: #{up_forward.2} parent=73 // pred_region
          %s918 = sand.u32 %s91, 1
          %s919 = sand.u32 %s91, 1
          %s920 = smul.addr %s919, 64
          %s921 = scalar_lea.vmem [#allocation2], %s920
        $region78: #{up_forward.2} parent=73 // pred_fallthru
          _
      $region74: #{up_forward.2} parent=5 // pred_fallthru
        _
    $region6: #{up_forward.2} parent=1 // loop_footer
      %s13 = sadd.s32 1, %s9
    $region7: #{up_forward.2} parent=1 // loop_footer_branch
      %8 = sbr.rel target = $region3
    $region8: #{up_forward.2} parent=1 // loop_exit
      _

// kernel: up_forward.3
$region0: #{up_forward.3}
  #allocation0 [shape = 'u32[]', space=smem, size = 0x4, offset = 0x4, fixed_abs, tag = 'smem constant byte address 0x4 - core index']
  #allocation1 [shape = 'u32[144,128]{1,0:T(1,128)}', space=vmem, size = 0x12000, scoped, tag = 'internal scratch']
  %s0 = inlined_call_operand.vmem [shape: f32[8,512], index: 0, kind: input, shape index: {}]
  %s1 = inlined_call_operand.vmem [shape: f32[9,512], index: 1, kind: input, shape index: {}]
  %s2 = inlined_call_operand.vmem [shape: bf16[8,72], index: 2, kind: input, shape index: {}]
  %s3 = inlined_call_operand.vmem [shape: bf16[4,72], index: 3, kind: input, shape index: {}]
  %s4 = inlined_call_operand.vmem [shape: f32[8,1], index: 4, kind: input, shape index: {}]
  %s5 = inlined_call_operand.vmem [shape: f32[8,1], index: 5, kind: input, shape index: {}]
  %s6 = inlined_call_operand.vmem [shape: f32[4,1], index: 6, kind: input, shape index: {}]
  %s7 = inlined_call_operand.vmem [shape: f32[4,1], index: 7, kind: input, shape index: {}]
  %s8 = inlined_call_operand.vmem [shape: f32[4,512], index: 8, kind: output, shape index: {}]
  %s9 = sld [smem:[#allocation0]]
  $region42: #{up_forward.3} parent=0
    _
  %s11 = ssub.s32 1, %s9
  %s12 = scalar_select 0, %s11, %s9
  // Predicated region
  $region2: #{up_forward.3} parent=0 // pred_check
    _
  $region3: #{up_forward.3} parent=0 // pred_check_branch
    %14 = sbr.rel (0) target = $region5
  $region4: #{up_forward.3} parent=0 // pred_region
    _
  $region5: #{up_forward.3} parent=0 // pred_fallthru
    _
  // Predicated region
  $region6: #{up_forward.3} parent=0 // pred_check
    _
  $region7: #{up_forward.3} parent=0 // pred_check_branch
    %16 = sbr.rel (0) target = $region9
  $region8: #{up_forward.3} parent=0 // pred_region
    _
  $region9: #{up_forward.3} parent=0 // pred_fallthru
    _
  // Predicated region
  $region10: #{up_forward.3} parent=0 // pred_check
    _
  $region11: #{up_forward.3} parent=0 // pred_check_branch
    %18 = sbr.rel (0) target = $region13
  $region12: #{up_forward.3} parent=0 // pred_region
    _
  $region13: #{up_forward.3} parent=0 // pred_fallthru
    _
  // Predicated region
  $region14: #{up_forward.3} parent=0 // pred_check
    _
  $region15: #{up_forward.3} parent=0 // pred_check_branch
    %20 = sbr.rel (0) target = $region17
  $region16: #{up_forward.3} parent=0 // pred_region
    _
  $region17: #{up_forward.3} parent=0 // pred_fallthru
    _
  // Predicated region
  $region18: #{up_forward.3} parent=0 // pred_check
    _
  $region19: #{up_forward.3} parent=0 // pred_check_branch
    %22 = sbr.rel (0) target = $region21
  $region20: #{up_forward.3} parent=0 // pred_region
    _
  $region21: #{up_forward.3} parent=0 // pred_fallthru
    _
  // Predicated region
  $region22: #{up_forward.3} parent=0 // pred_check
    _
  $region23: #{up_forward.3} parent=0 // pred_check_branch
    %24 = sbr.rel (0) target = $region25
  $region24: #{up_forward.3} parent=0 // pred_region
    _
  $region25: #{up_forward.3} parent=0 // pred_fallthru
    _
  // Predicated region
  $region26: #{up_forward.3} parent=0 // pred_check
    _
  $region27: #{up_forward.3} parent=0 // pred_check_branch
    %26 = sbr.rel (0) target = $region29
  $region28: #{up_forward.3} parent=0 // pred_region
    _
  $region29: #{up_forward.3} parent=0 // pred_fallthru
    _
  // Predicated region
  $region30: #{up_forward.3} parent=0 // pred_check
    _
  $region31: #{up_forward.3} parent=0 // pred_check_branch
    %28 = sbr.rel (0) target = $region33
  $region32: #{up_forward.3} parent=0 // pred_region
    _
  $region33: #{up_forward.3} parent=0 // pred_fallthru
    _
  %v30 = vld [vmem:[%s1] sm:$0xff]
  %v31 = vld [vmem:[%s1 + $0x8] sm:$0xff]
  %v32 = vld [vmem:[%s1 + $0x10] sm:$0xff]
  %v33 = vld [vmem:[%s1 + $0x18] sm:$0xff]
  %v34 = vld [vmem:[%s1 + $0x20] sm:$0x1]
  %v35 = vld [vmem:[%s1 + $0x28] sm:$0x1]
  %v36 = vld [vmem:[%s1 + $0x30] sm:$0x1]
  %v37 = vld [vmem:[%s1 + $0x38] sm:$0x1]
  %v38 = vld [vmem:[%s2] sm:$0xf]
  %v39 = vld [vmem:[%s0] sm:$0xff]
  %v40 = vld [vmem:[%s0 + $0x8] sm:$0xff]
  %v41 = vld [vmem:[%s0 + $0x10] sm:$0xff]
  %v42 = vld [vmem:[%s0 + $0x18] sm:$0xff]
  %43 = vrot.lane.b32.xlu0 %v39, 17
  %v44 = vpop.permute.xlu0 %43
  %45 = vrot.lane.b32.xlu0 %v40, 17
  %v46 = vpop.permute.xlu0 %45
  %47 = vrot.lane.b32.xlu0 %v41, 17
  %v48 = vpop.permute.xlu0 %47
  %49 = vrot.lane.b32.xlu0 %v42, 17
  %v50 = vpop.permute.xlu0 %49
  %v51 = vlaneseq
  %v52 = vand.u32 %v51, 127
  %vm53 = vcmp.lt.s32.totalorder %v52, 17
  %v54 = vsel %vm53, %v48, %v50
  %v55 = vsel %vm53, %v46, %v48
  %v56 = vsel %vm53, %v44, %v46
  %v57 = vsel %vm53, %v50, %v44
  %v58 = vlaneseq
  %v59 = vshrl.u32 %v58, 7
  %v60 = vsub.s32 0, %v59
  %v61 = vrot.slane %v30, %v60
  %v62 = vlaneseq
  %v63 = vshrl.u32 %v62, 7
  %v64 = vsub.s32 0, %v63
  %v65 = vrot.slane %v31, %v64
  %v66 = vlaneseq
  %v67 = vshrl.u32 %v66, 7
  %v68 = vsub.s32 0, %v67
  %v69 = vrot.slane %v32, %v68
  %v70 = vlaneseq
  %v71 = vshrl.u32 %v70, 7
  %v72 = vsub.s32 0, %v71
  %v73 = vrot.slane %v33, %v72
  %v74 = vmul.f32 %v57, %v61
  %v75 = vmul.f32 %v56, %v65
  %v76 = vmul.f32 %v55, %v69
  %v77 = vmul.f32 %v54, %v73
  %78 = vrot.lane.b32.xlu0 %v39, 16
  %v79 = vpop.permute.xlu0 %78
  %80 = vrot.lane.b32.xlu0 %v40, 16
  %v81 = vpop.permute.xlu0 %80
  %82 = vrot.lane.b32.xlu0 %v41, 16
  %v83 = vpop.permute.xlu0 %82
  %84 = vrot.lane.b32.xlu0 %v42, 16
  %v85 = vpop.permute.xlu0 %84
  %vm86 = vcmp.lt.s32.totalorder %v52, 16
  %v87 = vsel %vm86, %v83, %v85
  %v88 = vsel %vm86, %v81, %v83
  %v89 = vsel %vm86, %v79, %v81
  %v90 = vsel %vm86, %v85, %v79
  %v91 = vlaneseq
  %v92 = vshrl.u32 %v91, 7
  %v93 = vsub.s32 1, %v92
  %v94 = vrot.slane %v30, %v93
  %v95 = vlaneseq
  %v96 = vshrl.u32 %v95, 7
  %v97 = vsub.s32 1, %v96
  %v98 = vrot.slane %v31, %v97
  %v99 = vlaneseq
  %v100 = vshrl.u32 %v99, 7
  %v101 = vsub.s32 1, %v100
  %v102 = vrot.slane %v32, %v101
  %v103 = vlaneseq
  %v104 = vshrl.u32 %v103, 7
  %v105 = vsub.s32 1, %v104
  %v106 = vrot.slane %v33, %v105
  %v107 = vmul.f32 %v90, %v94
  %v108 = vmul.f32 %v89, %v98
  %v109 = vmul.f32 %v88, %v102
  %v110 = vmul.f32 %v87, %v106
  %111 = vrot.lane.b32.xlu0 %v39, 15
  %v112 = vpop.permute.xlu0 %111
  %113 = vrot.lane.b32.xlu0 %v40, 15
  %v114 = vpop.permute.xlu0 %113
  %115 = vrot.lane.b32.xlu0 %v41, 15
  %v116 = vpop.permute.xlu0 %115
  %117 = vrot.lane.b32.xlu0 %v42, 15
  %v118 = vpop.permute.xlu0 %117
  %vm119 = vcmp.lt.s32.totalorder %v52, 15
  %v120 = vsel %vm119, %v116, %v118
  %v121 = vsel %vm119, %v114, %v116
  %v122 = vsel %vm119, %v112, %v114
  %v123 = vsel %vm119, %v118, %v112
  %v124 = vlaneseq
  %v125 = vshrl.u32 %v124, 7
  %v126 = vsub.s32 2, %v125
  %v127 = vrot.slane %v30, %v126
  %v128 = vlaneseq
  %v129 = vshrl.u32 %v128, 7
  %v130 = vsub.s32 2, %v129
  %v131 = vrot.slane %v31, %v130
  %v132 = vlaneseq
  %v133 = vshrl.u32 %v132, 7
  %v134 = vsub.s32 2, %v133
  %v135 = vrot.slane %v32, %v134
  %v136 = vlaneseq
  %v137 = vshrl.u32 %v136, 7
  %v138 = vsub.s32 2, %v137
  %v139 = vrot.slane %v33, %v138
  %v140 = vmul.f32 %v123, %v127
  %v141 = vmul.f32 %v122, %v131
  %v142 = vmul.f32 %v121, %v135
  %v143 = vmul.f32 %v120, %v139
  %144 = vrot.lane.b32.xlu0 %v39, 1
  %v145 = vpop.permute.xlu0 %144
  %146 = vrot.lane.b32.xlu0 %v40, 1
  %v147 = vpop.permute.xlu0 %146
  %148 = vrot.lane.b32.xlu0 %v41, 1
  %v149 = vpop.permute.xlu0 %148
  %150 = vrot.lane.b32.xlu0 %v42, 1
  %v151 = vpop.permute.xlu0 %150
  %vm152 = vcmp.lt.s32.totalorder %v52, 1
  %v153 = vsel %vm152, %v149, %v151
  %v154 = vsel %vm152, %v147, %v149
  %v155 = vsel %vm152, %v145, %v147
  %v156 = vsel %vm152, %v151, %v145
  %v157 = vlaneseq
  %v158 = vshrl.u32 %v157, 7
  %v159 = vsub.s32 3, %v158
  %v160 = vrot.slane %v30, %v159
  %v161 = vlaneseq
  %v162 = vshrl.u32 %v161, 7
  %v163 = vsub.s32 3, %v162
  %v164 = vrot.slane %v31, %v163
  %v165 = vlaneseq
  %v166 = vshrl.u32 %v165, 7
  %v167 = vsub.s32 3, %v166
  %v168 = vrot.slane %v32, %v167
  %v169 = vlaneseq
  %v170 = vshrl.u32 %v169, 7
  %v171 = vsub.s32 3, %v170
  %v172 = vrot.slane %v33, %v171
  %v173 = vmul.f32 %v156, %v160
  %v174 = vmul.f32 %v155, %v164
  %v175 = vmul.f32 %v154, %v168
  %v176 = vmul.f32 %v153, %v172
  %177 = vrot.lane.b32.xlu0 %v39, 127
  %v178 = vpop.permute.xlu0 %177
  %179 = vrot.lane.b32.xlu0 %v40, 127
  %v180 = vpop.permute.xlu0 %179
  %181 = vrot.lane.b32.xlu0 %v41, 127
  %v182 = vpop.permute.xlu0 %181
  %183 = vrot.lane.b32.xlu0 %v42, 127
  %v184 = vpop.permute.xlu0 %183
  %vm185 = vcmp.lt.s32.totalorder %v52, 127
  %v186 = vsel %vm185, %v182, %v184
  %v187 = vsel %vm185, %v180, %v182
  %v188 = vsel %vm185, %v178, %v180
  %v189 = vsel %vm185, %v184, %v178
  %v190 = vlaneseq
  %v191 = vshrl.u32 %v190, 7
  %v192 = vsub.s32 5, %v191
  %v193 = vrot.slane %v30, %v192
  %v194 = vlaneseq
  %v195 = vshrl.u32 %v194, 7
  %v196 = vsub.s32 5, %v195
  %v197 = vrot.slane %v31, %v196
  %v198 = vlaneseq
  %v199 = vshrl.u32 %v198, 7
  %v200 = vsub.s32 5, %v199
  %v201 = vrot.slane %v32, %v200
  %v202 = vlaneseq
  %v203 = vshrl.u32 %v202, 7
  %v204 = vsub.s32 5, %v203
  %v205 = vrot.slane %v33, %v204
  %v206 = vmul.f32 %v188, %v193
  %v207 = vmul.f32 %v187, %v197
  %v208 = vmul.f32 %v186, %v201
  %v209 = vmul.f32 %v189, %v205
  %210 = vrot.lane.b32.xlu0 %v39, 113
  %v211 = vpop.permute.xlu0 %210
  %212 = vrot.lane.b32.xlu0 %v40, 113
  %v213 = vpop.permute.xlu0 %212
  %214 = vrot.lane.b32.xlu0 %v41, 113
  %v215 = vpop.permute.xlu0 %214
  %216 = vrot.lane.b32.xlu0 %v42, 113
  %v217 = vpop.permute.xlu0 %216
  %vm218 = vcmp.lt.s32.totalorder %v52, 113
  %v219 = vsel %vm218, %v215, %v217
  %v220 = vsel %vm218, %v213, %v215
  %v221 = vsel %vm218, %v211, %v213
  %v222 = vsel %vm218, %v217, %v211
  %v223 = vlaneseq
  %v224 = vshrl.u32 %v223, 7
  %v225 = vsub.s32 6, %v224
  %v226 = vrot.slane %v30, %v225
  %v227 = vlaneseq
  %v228 = vshrl.u32 %v227, 7
  %v229 = vsub.s32 6, %v228
  %v230 = vrot.slane %v31, %v229
  %v231 = vlaneseq
  %v232 = vshrl.u32 %v231, 7
  %v233 = vsub.s32 6, %v232
  %v234 = vrot.slane %v32, %v233
  %v235 = vlaneseq
  %v236 = vshrl.u32 %v235, 7
  %v237 = vsub.s32 6, %v236
  %v238 = vrot.slane %v33, %v237
  %v239 = vmul.f32 %v221, %v226
  %v240 = vmul.f32 %v220, %v230
  %v241 = vmul.f32 %v219, %v234
  %v242 = vmul.f32 %v222, %v238
  %243 = vrot.lane.b32.xlu0 %v39, 112
  %v244 = vpop.permute.xlu0 %243
  %245 = vrot.lane.b32.xlu0 %v40, 112
  %v246 = vpop.permute.xlu0 %245
  %247 = vrot.lane.b32.xlu0 %v41, 112
  %v248 = vpop.permute.xlu0 %247
  %249 = vrot.lane.b32.xlu0 %v42, 112
  %v250 = vpop.permute.xlu0 %249
  %vm251 = vcmp.lt.s32.totalorder %v52, 112
  %v252 = vsel %vm251, %v248, %v250
  %v253 = vsel %vm251, %v246, %v248
  %v254 = vsel %vm251, %v244, %v246
  %v255 = vsel %vm251, %v250, %v244
  %v256 = vlaneseq
  %v257 = vshrl.u32 %v256, 7
  %v258 = vsub.s32 7, %v257
  %v259 = vrot.slane %v30, %v258
  %v260 = vlaneseq
  %v261 = vshrl.u32 %v260, 7
  %v262 = vsub.s32 7, %v261
  %v263 = vrot.slane %v31, %v262
  %v264 = vlaneseq
  %v265 = vshrl.u32 %v264, 7
  %v266 = vsub.s32 7, %v265
  %v267 = vrot.slane %v32, %v266
  %v268 = vlaneseq
  %v269 = vshrl.u32 %v268, 7
  %v270 = vsub.s32 7, %v269
  %v271 = vrot.slane %v33, %v270
  %v272 = vmul.f32 %v254, %v259
  %v273 = vmul.f32 %v253, %v263
  %v274 = vmul.f32 %v252, %v267
  %v275 = vmul.f32 %v255, %v271
  %276 = vrot.lane.b32.xlu0 %v39, 111
  %v277 = vpop.permute.xlu0 %276
  %278 = vrot.lane.b32.xlu0 %v40, 111
  %v279 = vpop.permute.xlu0 %278
  %280 = vrot.lane.b32.xlu0 %v41, 111
  %v281 = vpop.permute.xlu0 %280
  %282 = vrot.lane.b32.xlu0 %v42, 111
  %v283 = vpop.permute.xlu0 %282
  %vm284 = vcmp.lt.s32.totalorder %v52, 111
  %v285 = vsel %vm284, %v281, %v283
  %v286 = vsel %vm284, %v279, %v281
  %v287 = vsel %vm284, %v277, %v279
  %v288 = vsel %vm284, %v283, %v277
  %v289 = vlaneseq
  %v290 = vshrl.u32 %v289, 7
  %v291 = vsub.s32 0, %v290
  %v292 = vrot.slane %v34, %v291
  %v293 = vlaneseq
  %v294 = vshrl.u32 %v293, 7
  %v295 = vsub.s32 0, %v294
  %v296 = vrot.slane %v35, %v295
  %v297 = vlaneseq
  %v298 = vshrl.u32 %v297, 7
  %v299 = vsub.s32 0, %v298
  %v300 = vrot.slane %v36, %v299
  %v301 = vlaneseq
  %v302 = vshrl.u32 %v301, 7
  %v303 = vsub.s32 0, %v302
  %v304 = vrot.slane %v37, %v303
  %v305 = vmul.f32 %v287, %v292
  %v306 = vmul.f32 %v286, %v296
  %v307 = vmul.f32 %v285, %v300
  %v308 = vmul.f32 %v288, %v304
  %v309 = vpack.c.bf16 %v107, %v74
  %v310 = vpack.c.bf16 %v108, %v75
  %v311 = vpack.c.bf16 %v109, %v76
  %v312 = vpack.c.bf16 %v110, %v77
  %v313 = vpack.c.bf16 %v173, %v140
  %v314 = vpack.c.bf16 %v174, %v141
  %v315 = vpack.c.bf16 %v175, %v142
  %v316 = vpack.c.bf16 %v176, %v143
  %v317 = vpack.c.bf16 %v206, %v39
  %v318 = vpack.c.bf16 %v207, %v40
  %v319 = vpack.c.bf16 %v208, %v41
  %v320 = vpack.c.bf16 %v209, %v42
  %v321 = vpack.c.bf16 %v272, %v239
  %v322 = vpack.c.bf16 %v273, %v240
  %v323 = vpack.c.bf16 %v274, %v241
  %v324 = vpack.c.bf16 %v275, %v242
  %v325 = vpack.c.bf16 %v305, %v305
  %v326 = vpack.c.bf16 %v306, %v306
  %v327 = vpack.c.bf16 %v307, %v307
  %v328 = vpack.c.bf16 %v308, %v308
  %vm329 = vcmask 588800
  %v331 = vsel %vm329, %v38, 0
  %vm333 = vcmask 1043456
  %v335 = vsel %vm333, %v325, 0
  %v338 = vsel %vm333, %v326, 0
  %v341 = vsel %vm333, %v327, 0
  %v344 = vsel %vm333, %v328, 0
  %346 = vmatprep.subr.bf16.mxu0 %v310
  %347 = vmatpush1.bf16.msra.mxu0 %v309
  %348 = vmatprep.subr.bf16.mxu0 %v314
  %349 = vmatpush1.bf16.msra.mxu0 %v313
  %350 = vmatprep.subr.bf16.mxu0 %v318
  %351 = vmatpush1.bf16.msra.mxu0 %v317
  %352 = vmatprep.subr.bf16.mxu0 %v322
  %353 = vmatpush1.bf16.msra.mxu0 %v321
  %354 = vmatprep.subr.bf16.mxu0 %v338
  %355 = vmatpush1.bf16.msra.mxu0 %v335
  %356 = vmatprep.subr.bf16.mxu0 0
  %357 = vmatpush1.bf16.msra.mxu0 0
  %358 = vmatprep.subr.bf16.mxu0 0
  %359 = vmatpush1.bf16.msra.mxu0 0
  %360 = vmatprep.subr.bf16.mxu0 0
  %361 = vmatpush1.bf16.msra.mxu0 0
  %362 = vmatprep.subr.bf16.mxu0 0
  %363 = vmatpush1.bf16.msra.mxu0 0
  %364 = vmatprep.subr.bf16.mxu0 0
  %365 = vmatpush1.bf16.msra.mxu0 0
  %366 = vmatprep.subr.bf16.mxu0 0
  %367 = vmatpush1.bf16.msra.mxu0 0
  %368 = vmatprep.subr.bf16.mxu0 0
  %369 = vmatpush1.bf16.msra.mxu0 0
  %370 = vmatprep.subr.bf16.mxu0 0
  %371 = vmatpush1.bf16.msra.mxu0 0
  %372 = vmatprep.subr.bf16.mxu0 0
  %373 = vmatpush1.bf16.msra.mxu0 0
  %374 = vmatprep.subr.bf16.mxu0 0
  %375 = vmatpush1.bf16.msra.mxu0 0
  %376 = vmatprep.subr.bf16.mxu0 0
  %377 = vmatpush1.bf16.msra.mxu0 0
  %378 = vmatprep.mubr.bf16.mxu0 0
  %379 = vmatmul.mubr.bf16.gmra.mrb[0].mxu0 %v331
  %v380 = vpop.f32.mrb[0].mxu0
  %v381 = vadd.f32 0.0, %v380
  %v382 = vpop.f32.mrb[0].mxu0
  %v383 = vadd.f32 0.0, %v382
  %v384 = vpop.f32.mrb[0].mxu0
  %v385 = vpop.f32.mrb[0].mxu0
  %386 = vdwg.mxu0
  %387 = vmatprep.subr.bf16.mxu0 %v312
  %388 = vmatpush1.bf16.msra.mxu0 %v311
  %389 = vmatprep.subr.bf16.mxu0 %v316
  %390 = vmatpush1.bf16.msra.mxu0 %v315
  %391 = vmatprep.subr.bf16.mxu0 %v320
  %392 = vmatpush1.bf16.msra.mxu0 %v319
  %393 = vmatprep.subr.bf16.mxu0 %v324
  %394 = vmatpush1.bf16.msra.mxu0 %v323
  %395 = vmatprep.subr.bf16.mxu0 %v344
  %396 = vmatpush1.bf16.msra.mxu0 %v341
  %397 = vmatprep.subr.bf16.mxu0 0
  %398 = vmatpush1.bf16.msra.mxu0 0
  %399 = vmatprep.subr.bf16.mxu0 0
  %400 = vmatpush1.bf16.msra.mxu0 0
  %401 = vmatprep.subr.bf16.mxu0 0
  %402 = vmatpush1.bf16.msra.mxu0 0
  %403 = vmatprep.subr.bf16.mxu0 0
  %404 = vmatpush1.bf16.msra.mxu0 0
  %405 = vmatprep.subr.bf16.mxu0 0
  %406 = vmatpush1.bf16.msra.mxu0 0
  %407 = vmatprep.subr.bf16.mxu0 0
  %408 = vmatpush1.bf16.msra.mxu0 0
  %409 = vmatprep.subr.bf16.mxu0 0
  %410 = vmatpush1.bf16.msra.mxu0 0
  %411 = vmatprep.subr.bf16.mxu0 0
  %412 = vmatpush1.bf16.msra.mxu0 0
  %413 = vmatprep.subr.bf16.mxu0 0
  %414 = vmatpush1.bf16.msra.mxu0 0
  %415 = vmatprep.subr.bf16.mxu0 0
  %416 = vmatpush1.bf16.msra.mxu0 0
  %417 = vmatprep.subr.bf16.mxu0 0
  %418 = vmatpush1.bf16.msra.mxu0 0
  %419 = vmatprep.mubr.bf16.mxu0 0
  %420 = vmatmul.mubr.bf16.gmra.mrb[0].mxu0 %v331
  %v421 = vpop.f32.mrb[0].mxu0
  %v422 = vadd.f32 0.0, %v421
  %v423 = vpop.f32.mrb[0].mxu0
  %v424 = vadd.f32 0.0, %v423
  %v425 = vpop.f32.mrb[0].mxu0
  %v426 = vpop.f32.mrb[0].mxu0
  %427 = vdwg.mxu0
  %v428 = vld [vmem:[%s4] sm:$0xff]
  %v429 = vld [vmem:[%s5] sm:$0xff]
  %v430 = vadd.f32 %v381, %v383
  %v431 = vadd.f32 %v430, %v422
  %v432 = vadd.f32 %v431, %v424
  %433 = vadd.xlane.f32.xlu0 %v432
  %v434 = vpop.xlane.xlu0 %433
  %v435 = vmul.f32 %v381, %v381
  %v436 = vmul.f32 %v383, %v383
  %v437 = vmul.f32 %v422, %v422
  %v438 = vmul.f32 %v424, %v424
  %v439 = vadd.f32 %v435, %v436
  %v440 = vadd.f32 %v439, %v437
  %v441 = vadd.f32 %v440, %v438
  %442 = vadd.xlane.f32.xlu0 %v441
  %v443 = vpop.xlane.xlu0 %442
  %v444 = vmul.f32 %v434, 0.001953125
  %v445 = vmul.f32 %v443, 0.001953125
  %v446 = vmul.f32 %v444, %v444
  %v447 = vsub.f32 %v445, %v446
  %v448 = vadd.f32 %v447, 1e-05
  %v449 = vrsqrt.pop %v448
  %v450 = vmul.f32 %v428, %v449
  %v451 = vmul.f32 %v444, %v450
  %v452 = vsub.f32 %v429, %v451
  %454 = vset.pattern.permute.xlu0 0
  %455 = vperm.xlu0 %454, %v450
  %v456 = vpop.permute.xlu0 %455
  %v458 = vmul.f32 %v381, %v456
  %v459 = vmul.f32 %v383, %v456
  %v460 = vmul.f32 %v422, %v456
  %v461 = vmul.f32 %v424, %v456
  %463 = vset.pattern.permute.xlu0 0
  %464 = vperm.xlu0 %463, %v452
  %v465 = vpop.permute.xlu0 %464
  %v467 = vadd.f32 %v458, %v465
  %v468 = vadd.f32 %v459, %v465
  %v469 = vadd.f32 %v460, %v465
  %v470 = vadd.f32 %v461, %v465
  %v471 = vmax.f32 %v467, 0.0
  %v472 = vmax.f32 %v468, 0.0
  %v473 = vmax.f32 %v469, 0.0
  %v474 = vmax.f32 %v470, 0.0
  %v475 = vld [vmem:[%s3] sm:$0x3]
  %476 = vrot.lane.b32.xlu0 %v471, 17
  %v477 = vpop.permute.xlu0 %476
  %478 = vrot.lane.b32.xlu0 %v472, 17
  %v479 = vpop.permute.xlu0 %478
  %480 = vrot.lane.b32.xlu0 %v473, 17
  %v481 = vpop.permute.xlu0 %480
  %482 = vrot.lane.b32.xlu0 %v474, 17
  %v483 = vpop.permute.xlu0 %482
  %v484 = vsel %vm53, %v481, %v483
  %v485 = vsel %vm53, %v479, %v481
  %v486 = vsel %vm53, %v477, %v479
  %v487 = vsel %vm53, %v483, %v477
  %v488 = vmul.f32 %v487, %v61
  %v489 = vmul.f32 %v486, %v65
  %v490 = vmul.f32 %v485, %v69
  %v491 = vmul.f32 %v484, %v73
  %492 = vrot.lane.b32.xlu0 %v471, 16
  %v493 = vpop.permute.xlu0 %492
  %494 = vrot.lane.b32.xlu0 %v472, 16
  %v495 = vpop.permute.xlu0 %494
  %496 = vrot.lane.b32.xlu0 %v473, 16
  %v497 = vpop.permute.xlu0 %496
  %498 = vrot.lane.b32.xlu0 %v474, 16
  %v499 = vpop.permute.xlu0 %498
  %v500 = vsel %vm86, %v497, %v499
  %v501 = vsel %vm86, %v495, %v497
  %v502 = vsel %vm86, %v493, %v495
  %v503 = vsel %vm86, %v499, %v493
  %v504 = vmul.f32 %v503, %v94
  %v505 = vmul.f32 %v502, %v98
  %v506 = vmul.f32 %v501, %v102
  %v507 = vmul.f32 %v500, %v106
  %508 = vrot.lane.b32.xlu0 %v471, 15
  %v509 = vpop.permute.xlu0 %508
  %510 = vrot.lane.b32.xlu0 %v472, 15
  %v511 = vpop.permute.xlu0 %510
  %512 = vrot.lane.b32.xlu0 %v473, 15
  %v513 = vpop.permute.xlu0 %512
  %514 = vrot.lane.b32.xlu0 %v474, 15
  %v515 = vpop.permute.xlu0 %514
  %v516 = vsel %vm119, %v513, %v515
  %v517 = vsel %vm119, %v511, %v513
  %v518 = vsel %vm119, %v509, %v511
  %v519 = vsel %vm119, %v515, %v509
  %v520 = vmul.f32 %v519, %v127
  %v521 = vmul.f32 %v518, %v131
  %v522 = vmul.f32 %v517, %v135
  %v523 = vmul.f32 %v516, %v139
  %524 = vrot.lane.b32.xlu0 %v471, 1
  %v525 = vpop.permute.xlu0 %524
  %526 = vrot.lane.b32.xlu0 %v472, 1
  %v527 = vpop.permute.xlu0 %526
  %528 = vrot.lane.b32.xlu0 %v473, 1
  %v529 = vpop.permute.xlu0 %528
  %530 = vrot.lane.b32.xlu0 %v474, 1
  %v531 = vpop.permute.xlu0 %530
  %v532 = vsel %vm152, %v529, %v531
  %v533 = vsel %vm152, %v527, %v529
  %v534 = vsel %vm152, %v525, %v527
  %v535 = vsel %vm152, %v531, %v525
  %v536 = vmul.f32 %v535, %v160
  %v537 = vmul.f32 %v534, %v164
  %v538 = vmul.f32 %v533, %v168
  %v539 = vmul.f32 %v532, %v172
  %540 = vrot.lane.b32.xlu0 %v471, 127
  %v541 = vpop.permute.xlu0 %540
  %542 = vrot.lane.b32.xlu0 %v472, 127
  %v543 = vpop.permute.xlu0 %542
  %544 = vrot.lane.b32.xlu0 %v473, 127
  %v545 = vpop.permute.xlu0 %544
  %546 = vrot.lane.b32.xlu0 %v474, 127
  %v547 = vpop.permute.xlu0 %546
  %v548 = vsel %vm185, %v545, %v547
  %v549 = vsel %vm185, %v543, %v545
  %v550 = vsel %vm185, %v541, %v543
  %v551 = vsel %vm185, %v547, %v541
  %v552 = vmul.f32 %v550, %v193
  %v553 = vmul.f32 %v549, %v197
  %v554 = vmul.f32 %v548, %v201
  %v555 = vmul.f32 %v551, %v205
  %556 = vrot.lane.b32.xlu0 %v471, 113
  %v557 = vpop.permute.xlu0 %556
  %558 = vrot.lane.b32.xlu0 %v472, 113
  %v559 = vpop.permute.xlu0 %558
  %560 = vrot.lane.b32.xlu0 %v473, 113
  %v561 = vpop.permute.xlu0 %560
  %562 = vrot.lane.b32.xlu0 %v474, 113
  %v563 = vpop.permute.xlu0 %562
  %v564 = vsel %vm218, %v561, %v563
  %v565 = vsel %vm218, %v559, %v561
  %v566 = vsel %vm218, %v557, %v559
  %v567 = vsel %vm218, %v563, %v557
  %v568 = vmul.f32 %v566, %v226
  %v569 = vmul.f32 %v565, %v230
  %v570 = vmul.f32 %v564, %v234
  %v571 = vmul.f32 %v567, %v238
  %572 = vrot.lane.b32.xlu0 %v471, 112
  %v573 = vpop.permute.xlu0 %572
  %574 = vrot.lane.b32.xlu0 %v472, 112
  %v575 = vpop.permute.xlu0 %574
  %576 = vrot.lane.b32.xlu0 %v473, 112
  %v577 = vpop.permute.xlu0 %576
  %578 = vrot.lane.b32.xlu0 %v474, 112
  %v579 = vpop.permute.xlu0 %578
  %v580 = vsel %vm251, %v577, %v579
  %v581 = vsel %vm251, %v575, %v577
  %v582 = vsel %vm251, %v573, %v575
  %v583 = vsel %vm251, %v579, %v573
  %v584 = vmul.f32 %v582, %v259
  %v585 = vmul.f32 %v581, %v263
  %v586 = vmul.f32 %v580, %v267
  %v587 = vmul.f32 %v583, %v271
  %588 = vrot.lane.b32.xlu0 %v471, 111
  %v589 = vpop.permute.xlu0 %588
  %590 = vrot.lane.b32.xlu0 %v472, 111
  %v591 = vpop.permute.xlu0 %590
  %592 = vrot.lane.b32.xlu0 %v473, 111
  %v593 = vpop.permute.xlu0 %592
  %594 = vrot.lane.b32.xlu0 %v474, 111
  %v595 = vpop.permute.xlu0 %594
  %v596 = vsel %vm284, %v593, %v595
  %v597 = vsel %vm284, %v591, %v593
  %v598 = vsel %vm284, %v589, %v591
  %v599 = vsel %vm284, %v595, %v589
  %v600 = vmul.f32 %v598, %v292
  %v601 = vmul.f32 %v597, %v296
  %v602 = vmul.f32 %v596, %v300
  %v603 = vmul.f32 %v599, %v304
  %v604 = vpack.c.bf16 %v504, %v488
  %v605 = vpack.c.bf16 %v505, %v489
  %v606 = vpack.c.bf16 %v506, %v490
  %v607 = vpack.c.bf16 %v507, %v491
  %v608 = vpack.c.bf16 %v536, %v520
  %v609 = vpack.c.bf16 %v537, %v521
  %v610 = vpack.c.bf16 %v538, %v522
  %v611 = vpack.c.bf16 %v539, %v523
  %v612 = vpack.c.bf16 %v552, %v471
  %v613 = vpack.c.bf16 %v553, %v472
  %v614 = vpack.c.bf16 %v554, %v473
  %v615 = vpack.c.bf16 %v555, %v474
  %v616 = vpack.c.bf16 %v584, %v568
  %v617 = vpack.c.bf16 %v585, %v569
  %v618 = vpack.c.bf16 %v586, %v570
  %v619 = vpack.c.bf16 %v587, %v571
  %v620 = vpack.c.bf16 %v600, %v600
  %v621 = vpack.c.bf16 %v601, %v601
  %v622 = vpack.c.bf16 %v602, %v602
  %v623 = vpack.c.bf16 %v603, %v603
  %v625 = vsel %vm329, %v475, 0
  %v628 = vsel %vm333, %v620, 0
  %v631 = vsel %vm333, %v621, 0
  %v634 = vsel %vm333, %v622, 0
  %v637 = vsel %vm333, %v623, 0
  %639 = vmatprep.subr.bf16.mxu0 %v605
  %640 = vmatpush1.bf16.msra.mxu0 %v604
  %641 = vmatprep.subr.bf16.mxu0 %v609
  %642 = vmatpush1.bf16.msra.mxu0 %v608
  %643 = vmatprep.subr.bf16.mxu0 %v613
  %644 = vmatpush1.bf16.msra.mxu0 %v612
  %645 = vmatprep.subr.bf16.mxu0 %v617
  %646 = vmatpush1.bf16.msra.mxu0 %v616
  %647 = vmatprep.subr.bf16.mxu0 %v631
  %648 = vmatpush1.bf16.msra.mxu0 %v628
  %649 = vmatprep.subr.bf16.mxu0 0
  %650 = vmatpush1.bf16.msra.mxu0 0
  %651 = vmatprep.subr.bf16.mxu0 0
  %652 = vmatpush1.bf16.msra.mxu0 0
  %653 = vmatprep.subr.bf16.mxu0 0
  %654 = vmatpush1.bf16.msra.mxu0 0
  %655 = vmatprep.subr.bf16.mxu0 0
  %656 = vmatpush1.bf16.msra.mxu0 0
  %657 = vmatprep.subr.bf16.mxu0 0
  %658 = vmatpush1.bf16.msra.mxu0 0
  %659 = vmatprep.subr.bf16.mxu0 0
  %660 = vmatpush1.bf16.msra.mxu0 0
  %661 = vmatprep.subr.bf16.mxu0 0
  %662 = vmatpush1.bf16.msra.mxu0 0
  %663 = vmatprep.subr.bf16.mxu0 0
  %664 = vmatpush1.bf16.msra.mxu0 0
  %665 = vmatprep.subr.bf16.mxu0 0
  %666 = vmatpush1.bf16.msra.mxu0 0
  %667 = vmatprep.subr.bf16.mxu0 0
  %668 = vmatpush1.bf16.msra.mxu0 0
  %669 = vmatprep.subr.bf16.mxu0 0
  %670 = vmatpush1.bf16.msra.mxu0 0
  %671 = vmatprep.mubr.bf16.mxu0 0
  %672 = vmatmul.mubr.bf16.gmra.mrb[0].mxu0 %v625
  %v673 = vpop.f32.mrb[0].mxu0
  %v674 = vadd.f32 0.0, %v673
  %v675 = vpop.f32.mrb[0].mxu0
  %v676 = vadd.f32 0.0, %v675
  %v677 = vpop.f32.mrb[0].mxu0
  %v678 = vpop.f32.mrb[0].mxu0
  %679 = vdwg.mxu0
  %680 = vmatprep.subr.bf16.mxu0 %v607
  %681 = vmatpush1.bf16.msra.mxu0 %v606
  %682 = vmatprep.subr.bf16.mxu0 %v611
  %683 = vmatpush1.bf16.msra.mxu0 %v610
  %684 = vmatprep.subr.bf16.mxu0 %v615
  %685 = vmatpush1.bf16.msra.mxu0 %v614
  %686 = vmatprep.subr.bf16.mxu0 %v619
  %687 = vmatpush1.bf16.msra.mxu0 %v618
  %688 = vmatprep.subr.bf16.mxu0 %v637
  %689 = vmatpush1.bf16.msra.mxu0 %v634
  %690 = vmatprep.subr.bf16.mxu0 0
  %691 = vmatpush1.bf16.msra.mxu0 0
  %692 = vmatprep.subr.bf16.mxu0 0
  %693 = vmatpush1.bf16.msra.mxu0 0
  %694 = vmatprep.subr.bf16.mxu0 0
  %695 = vmatpush1.bf16.msra.mxu0 0
  %696 = vmatprep.subr.bf16.mxu0 0
  %697 = vmatpush1.bf16.msra.mxu0 0
  %698 = vmatprep.subr.bf16.mxu0 0
  %699 = vmatpush1.bf16.msra.mxu0 0
  %700 = vmatprep.subr.bf16.mxu0 0
  %701 = vmatpush1.bf16.msra.mxu0 0
  %702 = vmatprep.subr.bf16.mxu0 0
  %703 = vmatpush1.bf16.msra.mxu0 0
  %704 = vmatprep.subr.bf16.mxu0 0
  %705 = vmatpush1.bf16.msra.mxu0 0
  %706 = vmatprep.subr.bf16.mxu0 0
  %707 = vmatpush1.bf16.msra.mxu0 0
  %708 = vmatprep.subr.bf16.mxu0 0
  %709 = vmatpush1.bf16.msra.mxu0 0
  %710 = vmatprep.subr.bf16.mxu0 0
  %711 = vmatpush1.bf16.msra.mxu0 0
  %712 = vmatprep.mubr.bf16.mxu0 0
  %713 = vmatmul.mubr.bf16.gmra.mrb[0].mxu0 %v625
  %v714 = vpop.f32.mrb[0].mxu0
  %v715 = vadd.f32 0.0, %v714
  %v716 = vpop.f32.mrb[0].mxu0
  %v717 = vadd.f32 0.0, %v716
  %v718 = vpop.f32.mrb[0].mxu0
  %v719 = vpop.f32.mrb[0].mxu0
  %720 = vdwg.mxu0
  %v721 = vld [vmem:[%s6] sm:$0xf]
  %v722 = vld [vmem:[%s7] sm:$0xf]
  %v723 = vsel %vm333, %v674, 0.0
  %v724 = vsel %vm333, %v676, 0.0
  %v725 = vadd.f32 %v723, %v724
  %v726 = vsel %vm333, %v715, 0.0
  %v727 = vadd.f32 %v725, %v726
  %v728 = vsel %vm333, %v717, 0.0
  %v729 = vadd.f32 %v727, %v728
  %730 = vadd.xlane.f32.xlu0 %v729
  %v731 = vpop.xlane.xlu0 %730
  %v732 = vmul.f32 %v674, %v674
  %v733 = vmul.f32 %v676, %v676
  %v734 = vmul.f32 %v715, %v715
  %v735 = vmul.f32 %v717, %v717
  %v736 = vsel %vm333, %v732, 0.0
  %v737 = vsel %vm333, %v733, 0.0
  %v738 = vadd.f32 %v736, %v737
  %v739 = vsel %vm333, %v734, 0.0
  %v740 = vadd.f32 %v738, %v739
  %v741 = vsel %vm333, %v735, 0.0
  %v742 = vadd.f32 %v740, %v741
  %743 = vadd.xlane.f32.xlu0 %v742
  %v744 = vpop.xlane.xlu0 %743
  %v745 = vmul.f32 %v731, 0.001953125
  %v746 = vmul.f32 %v744, 0.001953125
  %v747 = vmul.f32 %v745, %v745
  %v748 = vsub.f32 %v746, %v747
  %v749 = vadd.f32 %v748, 1e-05
  %v750 = vrsqrt.pop %v749
  %v751 = vmul.f32 %v721, %v750
  %v752 = vmul.f32 %v745, %v751
  %v753 = vsub.f32 %v722, %v752
  %755 = vset.pattern.permute.xlu0 0
  %756 = vperm.xlu0 %755, %v751
  %v757 = vpop.permute.xlu0 %756
  %v759 = vmul.f32 %v674, %v757
  %v760 = vmul.f32 %v676, %v757
  %v761 = vmul.f32 %v715, %v757
  %v762 = vmul.f32 %v717, %v757
  %764 = vset.pattern.permute.xlu0 0
  %765 = vperm.xlu0 %764, %v753
  %v766 = vpop.permute.xlu0 %765
  %v768 = vadd.f32 %v759, %v766
  %v769 = vadd.f32 %v760, %v766
  %v770 = vadd.f32 %v761, %v766
  %v771 = vadd.f32 %v762, %v766
  %v772 = vmax.f32 %v768, 0.0
  %v773 = vmax.f32 %v769, 0.0
  %v774 = vmax.f32 %v770, 0.0
  %v775 = vmax.f32 %v771, 0.0
  %v780 = vcombine.low %v772, %v773
  %v781 = vcombine.low %v774, %v775
  %784 = vst [vmem:[%s8] sm:$0xff] %v780
  %785 = vst [vmem:[%s8 + $0x8] sm:$0xff] %v781
  // Predicated region
  $region34: #{up_forward.3} parent=0 // pred_check
    _
  $region35: #{up_forward.3} parent=0 // pred_check_branch
    %787 = sbr.rel (0) target = $region37
  $region36: #{up_forward.3} parent=0 // pred_region
    _
  $region37: #{up_forward.3} parent=0 // pred_fallthru
    _
  // Predicated region
  $region38: #{up_forward.3} parent=0 // pred_check
    _
  $region39: #{up_forward.3} parent=0 // pred_check_branch
    %789 = sbr.rel (0) target = $region41
  $region40: #{up_forward.3} parent=0 // pred_region
    _
  $region41: #{up_forward.3} parent=0 // pred_fallthru
    _

</llo_original>
